<compile_context>
chip_gen: v7x
topology: tpu7x:2x2x1
jax: 0.10.0
libtpu: 0.0.40
codegen_flags: <defaults>
</compile_context>

<pallas_src>
import functools
import math

import jax
import jax.numpy as jnp
from jax.experimental import pallas as pl
from jax.experimental.pallas import tpu as pltpu


def _mha_kernel(*refs, n_heads, d_k, d_model, block_n, seq_len, has_mask):
    """block_n batch elements per grid step, all heads statically unrolled."""
    if has_mask:
        (xv_ref, xq_ref, wv_ref, bv_ref, wq_ref, bq_ref,
         wo_ref, bo_ref, bias_ref, o_ref) = refs
    else:
        (xv_ref, xq_ref, wv_ref, bv_ref, wq_ref, bq_ref,
         wo_ref, bo_ref, o_ref) = refs
        bias_ref = None

    nb, t = block_n, seq_len
    rows = nb * t
    cdt = xq_ref.dtype               # MXU operand dtype (bf16 by default)

    xv = xv_ref[...].reshape(rows, d_model)
    xq = xq_ref[...].reshape(rows, d_model)

    # Value / query projections: single wide MXU matmuls with f32 accumulation.
    # (The key projection of the reference module is dead code -> not computed.)
    v = jnp.dot(xv, wv_ref[...], preferred_element_type=jnp.float32) + bv_ref[...]
    q = jnp.dot(xq, wq_ref[...], preferred_element_type=jnp.float32) + bq_ref[...]
    # 1/sqrt(d_k) is already folded into wq / bq by the wrapper.

    q_c = q.astype(cdt)
    v_c = v.astype(cdt)

    bias = bias_ref[...] if has_mask else None       # (nb, 1, t): 0 / -1e30

    out_acc = jnp.zeros((rows, d_model), jnp.float32)
    for h in range(n_heads):                          # static unroll over heads
        lo, hi = h * d_k, (h + 1) * d_k
        qh = q_c[:, lo:hi].reshape(nb, t, d_k)
        vh = v_c[:, lo:hi].reshape(nb, t, d_k)

        # scores_ij = sum_d q_id * v_jd  (reference contracts q with *v*).
        s = jax.lax.dot_general(qh, vh, (((2,), (2,)), ((0,), (0,))),
                                preferred_element_type=jnp.float32)   # (nb,t,t)
        if has_mask:
            # Additive mask bias. NOTE: a fully-masked query row gives a
            # uniform softmax here, where PyTorch would produce NaN (both are
            # degenerate; the demo avoids such rows).
            s = s + bias
        s = s - jnp.max(s, axis=-1, keepdims=True)
        p = jnp.exp(s)
        w = p * pl.reciprocal(jnp.sum(p, axis=-1, keepdims=True), approx=True)

        ah = jax.lax.dot_general(w.astype(cdt), vh, (((2,), (1,)), ((0,), (0,))),
                                 preferred_element_type=jnp.float32)  # (nb,t,dk)
        # Fold this head straight into the output projection using the
        # sublane-aligned d_k-row slice of W_o: no concat, no scratch.
        out_acc = out_acc + jnp.dot(
            ah.reshape(rows, d_k).astype(cdt),
            wo_ref[lo:hi, :],
            preferred_element_type=jnp.float32)

    out = out_acc + bo_ref[...]
    o_ref[...] = out.reshape(nb, t, d_model).astype(o_ref.dtype)


def multi_head_attention(x_k, x_v, x_q, params, *, n_heads, d_k, mask=None,
                         compute_dtype=jnp.bfloat16, block_n=None):
    """Pallas equivalent of MultiHeadAttention(d_k, d_model, n_heads)(x_k, x_v, x_q, mask).

    x_k / params['wk'] / params['bk'] are accepted for API parity but never
    reach the device kernel: the reference forward's score einsum uses q and v,
    so the key path is dead code.
    """
    del x_k                                   # dead in the reference forward
    N, T, d_model = x_q.shape
    hdk = n_heads * d_k
    out_dtype = x_q.dtype
    cdt = jnp.dtype(compute_dtype)

    if block_n is None:   # batch as many sequences per grid step as reasonable
        block_n = 1
        for b in range(1, N + 1):
            if N % b == 0 and b * T <= 512:
                block_n = b
    assert N % block_n == 0, "block_n must divide N"

    scale = 1.0 / math.sqrt(d_k)

    xv = x_v.astype(cdt)
    xq = x_q.astype(cdt)
    wv = params["wv"].astype(cdt)
    wq = (params["wq"] * scale).astype(cdt)   # fold 1/sqrt(d_k) into projection
    wo = params["wo"].astype(cdt)
    bv2 = params["bv"].reshape(1, hdk).astype(jnp.float32)
    bq2 = (params["bq"] * scale).reshape(1, hdk).astype(jnp.float32)
    bo2 = params["bo"].reshape(1, d_model).astype(jnp.float32)

    x_spec = pl.BlockSpec((block_n, T, d_model), lambda n: (n, 0, 0))
    w_in_spec = pl.BlockSpec((d_model, hdk), lambda n: (0, 0))   # VMEM-resident
    b_in_spec = pl.BlockSpec((1, hdk), lambda n: (0, 0))
    wo_spec = pl.BlockSpec((hdk, d_model), lambda n: (0, 0))
    bo_spec = pl.BlockSpec((1, d_model), lambda n: (0, 0))
    out_spec = pl.BlockSpec((block_n, T, d_model), lambda n: (n, 0, 0))

    operands = [xv, xq, wv, bv2, wq, bq2, wo, bo2]
    in_specs = [x_spec, x_spec, w_in_spec, b_in_spec, w_in_spec, b_in_spec,
                wo_spec, bo_spec]

    has_mask = mask is not None
    if has_mask:
        # Additive bias: 0 where kept, -1e30 where masked (applied pre-softmax).
        bias = jnp.where(mask.reshape(N, 1, T) == 0,
                         jnp.float32(-1e30), jnp.float32(0.0))
        operands.append(bias)
        in_specs.append(pl.BlockSpec((block_n, 1, T), lambda n: (n, 0, 0)))

    kernel = functools.partial(
        _mha_kernel, n_heads=n_heads, d_k=d_k, d_model=d_model,
        block_n=block_n, seq_len=T, has_mask=has_mask)

    return pl.pallas_call(
        kernel,
        out_shape=jax.ShapeDtypeStruct((N, T, d_model), out_dtype),
        grid=(N // block_n,),
        in_specs=in_specs,
        out_specs=out_spec,
        compiler_params=pltpu.CompilerParams(
            dimension_semantics=("parallel",),
            vmem_limit_bytes=64 * 1024 * 1024),
    )(*operands)


def _reference_mha(x_k, x_v, x_q, params, n_heads, d_k, mask=None):
    """Plain-JAX replica of the PyTorch forward (including the q·v score quirk)."""
    k = x_k @ params["wk"] + params["bk"]
    v = x_v @ params["wv"] + params["bv"]
    q = x_q @ params["wq"] + params["bq"]
    del k
    N, T, _ = q.shape

    def split(t):  # 'n t (h d) -> n h t d'
        return t.reshape(N, T, n_heads, d_k).transpose(0, 2, 1, 3)

    qh, vh = split(q), split(v)
    scores = jnp.einsum('nhid,nhjd->nhij', qh, vh) / math.sqrt(d_k)
    if mask is not None:
        scores = jnp.where(mask[:, None, None, :] == 0, -jnp.inf, scores)
    w = jax.nn.softmax(scores, axis=-1)
    a = jnp.einsum('nhij,nhjd->nhid', w, vh)
    a = a.transpose(0, 2, 1, 3).reshape(N, T, n_heads * d_k)
    return a @ params["wo"] + params["bo"]


if __name__ == "__main__":
    d_model, n_heads, d_k = 32, 4, 8
    N, T = 2, 8
    hdk = n_heads * d_k

    key = jax.random.PRNGKey(0)
    ks = jax.random.split(key, 12)
    s_in = 1.0 / math.sqrt(d_model)
    s_out = 1.0 / math.sqrt(hdk)
    # Deterministic nn.Linear-style uniform init.
    params = dict(
        wk=jax.random.uniform(ks[0], (d_model, hdk), jnp.float32, -s_in, s_in),
        bk=jax.random.uniform(ks[1], (hdk,), jnp.float32, -s_in, s_in),
        wv=jax.random.uniform(ks[2], (d_model, hdk), jnp.float32, -s_in, s_in),
        bv=jax.random.uniform(ks[3], (hdk,), jnp.float32, -s_in, s_in),
        wq=jax.random.uniform(ks[4], (d_model, hdk), jnp.float32, -s_in, s_in),
        bq=jax.random.uniform(ks[5], (hdk,), jnp.float32, -s_in, s_in),
        wo=jax.random.uniform(ks[6], (hdk, d_model), jnp.float32, -s_out, s_out),
        bo=jax.random.uniform(ks[7], (d_model,), jnp.float32, -s_out, s_out),
    )

    x_k = jax.random.normal(ks[8], (N, T, d_model), dtype=jnp.float32)
    x_v = jax.random.normal(ks[9], (N, T, d_model), dtype=jnp.float32)
    x_q = jax.random.normal(ks[10], (N, T, d_model), dtype=jnp.float32)

    # Padding-style mask (1 = keep, 0 = masked); keep position 0 valid so no
    # query row is fully masked (PyTorch would produce NaNs there too).
    mask = (jax.random.uniform(ks[11], (N, T)) > 0.3).astype(jnp.float32)
    mask = mask.at[:, 0].set(1.0)

    ref_nomask = _reference_mha(x_k, x_v, x_q, params, n_heads, d_k, None)
    ref_masked = _reference_mha(x_k, x_v, x_q, params, n_heads, d_k, mask)

    # f32 MXU path (tighter correctness check; approx reciprocal still used).
    out_f32 = jax.block_until_ready(
        multi_head_attention(x_k, x_v, x_q, params, n_heads=n_heads, d_k=d_k,
                             compute_dtype=jnp.float32))
    out_f32_m = jax.block_until_ready(
        multi_head_attention(x_k, x_v, x_q, params, n_heads=n_heads, d_k=d_k,
                             mask=mask, compute_dtype=jnp.float32))
    assert out_f32.shape == (N, T, d_model)
    assert out_f32.dtype == jnp.float32
    assert jnp.allclose(out_f32, ref_nomask, atol=1e-2, rtol=1e-2), \
        "f32 path mismatch vs reference MHA (mask=None)"
    assert jnp.allclose(out_f32_m, ref_masked, atol=1e-2, rtol=1e-2), \
        "f32 path mismatch vs reference MHA (with mask)"

    # Default bf16 MXU path (performance configuration) — looser tolerance.
    out_bf16 = jax.block_until_ready(
        multi_head_attention(x_k, x_v, x_q, params, n_heads=n_heads, d_k=d_k))
    out_bf16_m = jax.block_until_ready(
        multi_head_attention(x_k, x_v, x_q, params, n_heads=n_heads, d_k=d_k,
                             mask=mask))
    assert out_bf16.shape == (N, T, d_model)
    assert out_bf16.dtype == jnp.float32
    assert jnp.allclose(out_bf16, ref_nomask, atol=3e-2, rtol=3e-2), \
        "bf16 path mismatch vs reference MHA (mask=None)"
    assert jnp.allclose(out_bf16_m, ref_masked, atol=3e-2, rtol=3e-2), \
        "bf16 path mismatch vs reference MHA (with mask)"

    print("KERNEL_OK")
</pallas_src>

<mosaic_0001>
module attributes {stable_mosaic.version = 11 : i64} {
  func.func @_mha_kernel(%arg0: i32, %arg1: memref<2x8x32xf32, #tpu.memory_space<vmem>>, %arg2: memref<2x8x32xf32, #tpu.memory_space<vmem>>, %arg3: memref<32x32xf32, #tpu.memory_space<vmem>>, %arg4: memref<1x32xf32, #tpu.memory_space<vmem>>, %arg5: memref<32x32xf32, #tpu.memory_space<vmem>>, %arg6: memref<1x32xf32, #tpu.memory_space<vmem>>, %arg7: memref<32x32xf32, #tpu.memory_space<vmem>>, %arg8: memref<1x32xf32, #tpu.memory_space<vmem>>, %arg9: memref<2x8x32xf32, #tpu.memory_space<vmem>>) attributes {dimension_semantics = [#tpu.dimension_semantics<parallel>], iteration_bounds = array<i64: 1>, scalar_prefetch = 0 : i64, scratch_operands = 0 : i64, tpu.core_type = #tpu.core_type<tc>, window_params = [{transform_indices = @transform_0, window_bounds = array<i64: 2, 8, 32>}, {transform_indices = @transform_1, window_bounds = array<i64: 2, 8, 32>}, {pipeline_mode = #tpu.pipeline_mode<synchronous>, transform_indices = @transform_2, window_bounds = array<i64: 32, 32>}, {pipeline_mode = #tpu.pipeline_mode<synchronous>, transform_indices = @transform_3, window_bounds = array<i64: 1, 32>}, {pipeline_mode = #tpu.pipeline_mode<synchronous>, transform_indices = @transform_4, window_bounds = array<i64: 32, 32>}, {pipeline_mode = #tpu.pipeline_mode<synchronous>, transform_indices = @transform_5, window_bounds = array<i64: 1, 32>}, {pipeline_mode = #tpu.pipeline_mode<synchronous>, transform_indices = @transform_6, window_bounds = array<i64: 32, 32>}, {pipeline_mode = #tpu.pipeline_mode<synchronous>, transform_indices = @transform_7, window_bounds = array<i64: 1, 32>}, {transform_indices = @transform_8, window_bounds = array<i64: 2, 8, 32>}]} {
    %c0 = arith.constant 0 : index
    %c0_0 = arith.constant 0 : index
    %c0_1 = arith.constant 0 : index
    %0 = vector.load %arg1[%c0, %c0_0, %c0_1] : memref<2x8x32xf32, #tpu.memory_space<vmem>>, vector<2x8x32xf32>
    %1 = vector.shape_cast %0 : vector<2x8x32xf32> to vector<16x32xf32>
    %c0_2 = arith.constant 0 : index
    %c0_3 = arith.constant 0 : index
    %c0_4 = arith.constant 0 : index
    %2 = vector.load %arg2[%c0_2, %c0_3, %c0_4] : memref<2x8x32xf32, #tpu.memory_space<vmem>>, vector<2x8x32xf32>
    %3 = vector.shape_cast %2 : vector<2x8x32xf32> to vector<16x32xf32>
    %c0_5 = arith.constant 0 : index
    %c0_6 = arith.constant 0 : index
    %4 = vector.load %arg3[%c0_5, %c0_6] : memref<32x32xf32, #tpu.memory_space<vmem>>, vector<32x32xf32>
    %cst = arith.constant dense<0.000000e+00> : vector<16x32xf32>
    %5 = tpu.matmul %1, %4, %cst {dimension_numbers = #tpu.dot_dimension_numbers<[1], [0], [0], [1], [0, 0, 1, 1], [], []>} : vector<16x32xf32>, vector<32x32xf32>, vector<16x32xf32> -> vector<16x32xf32>
    %c0_7 = arith.constant 0 : index
    %c0_8 = arith.constant 0 : index
    %6 = vector.load %arg4[%c0_7, %c0_8] : memref<1x32xf32, #tpu.memory_space<vmem>>, vector<1x32xf32>
    %7 = vector.broadcast %6 : vector<1x32xf32> to vector<16x32xf32>
    %8 = arith.addf %5, %7 : vector<16x32xf32>
    %c0_9 = arith.constant 0 : index
    %c0_10 = arith.constant 0 : index
    %9 = vector.load %arg5[%c0_9, %c0_10] : memref<32x32xf32, #tpu.memory_space<vmem>>, vector<32x32xf32>
    %cst_11 = arith.constant dense<0.000000e+00> : vector<16x32xf32>
    %10 = tpu.matmul %3, %9, %cst_11 {dimension_numbers = #tpu.dot_dimension_numbers<[1], [0], [0], [1], [0, 0, 1, 1], [], []>} : vector<16x32xf32>, vector<32x32xf32>, vector<16x32xf32> -> vector<16x32xf32>
    %c0_12 = arith.constant 0 : index
    %c0_13 = arith.constant 0 : index
    %11 = vector.load %arg6[%c0_12, %c0_13] : memref<1x32xf32, #tpu.memory_space<vmem>>, vector<1x32xf32>
    %12 = vector.broadcast %11 : vector<1x32xf32> to vector<16x32xf32>
    %13 = arith.addf %10, %12 : vector<16x32xf32>
    %cst_14 = arith.constant 0.000000e+00 : f32
    %14 = vector.broadcast %cst_14 : f32 to vector<16x32xf32>
    %15 = vector.extract_strided_slice %13 {offsets = [0, 0], sizes = [16, 8], strides = [1, 1]} : vector<16x32xf32> to vector<16x8xf32>
    %16 = vector.shape_cast %15 : vector<16x8xf32> to vector<2x8x8xf32>
    %17 = vector.extract_strided_slice %8 {offsets = [0, 0], sizes = [16, 8], strides = [1, 1]} : vector<16x32xf32> to vector<16x8xf32>
    %18 = vector.shape_cast %17 : vector<16x8xf32> to vector<2x8x8xf32>
    %cst_15 = arith.constant dense<0.000000e+00> : vector<2x8x8xf32>
    %19 = tpu.matmul %16, %18, %cst_15 {dimension_numbers = #tpu.dot_dimension_numbers<[2], [2], [1], [1], [0, 0, 0, 1, 1, 1], [0], [0]>} : vector<2x8x8xf32>, vector<2x8x8xf32>, vector<2x8x8xf32> -> vector<2x8x8xf32>
    %cst_16 = arith.constant dense<0xFF800000> : vector<2x8xf32>
    %20 = vector.multi_reduction <maximumf>, %19, %cst_16 [2] : vector<2x8x8xf32> to vector<2x8xf32>
    %21 = vector.shape_cast %20 : vector<2x8xf32> to vector<2x8x1xf32>
    %22 = vector.broadcast %21 : vector<2x8x1xf32> to vector<2x8x8xf32>
    %23 = arith.subf %19, %22 : vector<2x8x8xf32>
    %24 = math.exp %23 : vector<2x8x8xf32>
    %cst_17 = arith.constant dense<0.000000e+00> : vector<2x8xf32>
    %25 = vector.multi_reduction <add>, %24, %cst_17 [2] : vector<2x8x8xf32> to vector<2x8xf32>
    %26 = vector.shape_cast %25 : vector<2x8xf32> to vector<2x8x1xf32>
    %27 = tpu.reciprocal %26 {approx = true} : vector<2x8x1xf32> -> vector<2x8x1xf32>
    %28 = vector.broadcast %27 : vector<2x8x1xf32> to vector<2x8x8xf32>
    %29 = arith.mulf %24, %28 : vector<2x8x8xf32>
    %cst_18 = arith.constant dense<0.000000e+00> : vector<2x8x8xf32>
    %30 = tpu.matmul %29, %18, %cst_18 {dimension_numbers = #tpu.dot_dimension_numbers<[2], [1], [1], [2], [0, 0, 0, 1, 1, 2], [0], [0]>} : vector<2x8x8xf32>, vector<2x8x8xf32>, vector<2x8x8xf32> -> vector<2x8x8xf32>
    %31 = vector.shape_cast %30 : vector<2x8x8xf32> to vector<16x8xf32>
    %c0_19 = arith.constant 0 : index
    %c0_20 = arith.constant 0 : index
    %32 = vector.load %arg7[%c0_19, %c0_20] : memref<32x32xf32, #tpu.memory_space<vmem>>, vector<8x32xf32>
    %cst_21 = arith.constant dense<0.000000e+00> : vector<16x32xf32>
    %33 = tpu.matmul %31, %32, %cst_21 {dimension_numbers = #tpu.dot_dimension_numbers<[1], [0], [0], [1], [0, 0, 1, 1], [], []>} : vector<16x8xf32>, vector<8x32xf32>, vector<16x32xf32> -> vector<16x32xf32>
    %34 = arith.addf %14, %33 : vector<16x32xf32>
    %35 = vector.extract_strided_slice %13 {offsets = [0, 8], sizes = [16, 8], strides = [1, 1]} : vector<16x32xf32> to vector<16x8xf32>
    %36 = vector.shape_cast %35 : vector<16x8xf32> to vector<2x8x8xf32>
    %37 = vector.extract_strided_slice %8 {offsets = [0, 8], sizes = [16, 8], strides = [1, 1]} : vector<16x32xf32> to vector<16x8xf32>
    %38 = vector.shape_cast %37 : vector<16x8xf32> to vector<2x8x8xf32>
    %cst_22 = arith.constant dense<0.000000e+00> : vector<2x8x8xf32>
    %39 = tpu.matmul %36, %38, %cst_22 {dimension_numbers = #tpu.dot_dimension_numbers<[2], [2], [1], [1], [0, 0, 0, 1, 1, 1], [0], [0]>} : vector<2x8x8xf32>, vector<2x8x8xf32>, vector<2x8x8xf32> -> vector<2x8x8xf32>
    %cst_23 = arith.constant dense<0xFF800000> : vector<2x8xf32>
    %40 = vector.multi_reduction <maximumf>, %39, %cst_23 [2] : vector<2x8x8xf32> to vector<2x8xf32>
    %41 = vector.shape_cast %40 : vector<2x8xf32> to vector<2x8x1xf32>
    %42 = vector.broadcast %41 : vector<2x8x1xf32> to vector<2x8x8xf32>
    %43 = arith.subf %39, %42 : vector<2x8x8xf32>
    %44 = math.exp %43 : vector<2x8x8xf32>
    %cst_24 = arith.constant dense<0.000000e+00> : vector<2x8xf32>
    %45 = vector.multi_reduction <add>, %44, %cst_24 [2] : vector<2x8x8xf32> to vector<2x8xf32>
    %46 = vector.shape_cast %45 : vector<2x8xf32> to vector<2x8x1xf32>
    %47 = tpu.reciprocal %46 {approx = true} : vector<2x8x1xf32> -> vector<2x8x1xf32>
    %48 = vector.broadcast %47 : vector<2x8x1xf32> to vector<2x8x8xf32>
    %49 = arith.mulf %44, %48 : vector<2x8x8xf32>
    %cst_25 = arith.constant dense<0.000000e+00> : vector<2x8x8xf32>
    %50 = tpu.matmul %49, %38, %cst_25 {dimension_numbers = #tpu.dot_dimension_numbers<[2], [1], [1], [2], [0, 0, 0, 1, 1, 2], [0], [0]>} : vector<2x8x8xf32>, vector<2x8x8xf32>, vector<2x8x8xf32> -> vector<2x8x8xf32>
    %51 = vector.shape_cast %50 : vector<2x8x8xf32> to vector<16x8xf32>
    %c8 = arith.constant 8 : index
    %c0_26 = arith.constant 0 : index
    %52 = vector.load %arg7[%c8, %c0_26] : memref<32x32xf32, #tpu.memory_space<vmem>>, vector<8x32xf32>
    %cst_27 = arith.constant dense<0.000000e+00> : vector<16x32xf32>
    %53 = tpu.matmul %51, %52, %cst_27 {dimension_numbers = #tpu.dot_dimension_numbers<[1], [0], [0], [1], [0, 0, 1, 1], [], []>} : vector<16x8xf32>, vector<8x32xf32>, vector<16x32xf32> -> vector<16x32xf32>
    %54 = arith.addf %34, %53 : vector<16x32xf32>
    %55 = vector.extract_strided_slice %13 {offsets = [0, 16], sizes = [16, 8], strides = [1, 1]} : vector<16x32xf32> to vector<16x8xf32>
    %56 = vector.shape_cast %55 : vector<16x8xf32> to vector<2x8x8xf32>
    %57 = vector.extract_strided_slice %8 {offsets = [0, 16], sizes = [16, 8], strides = [1, 1]} : vector<16x32xf32> to vector<16x8xf32>
    %58 = vector.shape_cast %57 : vector<16x8xf32> to vector<2x8x8xf32>
    %cst_28 = arith.constant dense<0.000000e+00> : vector<2x8x8xf32>
    %59 = tpu.matmul %56, %58, %cst_28 {dimension_numbers = #tpu.dot_dimension_numbers<[2], [2], [1], [1], [0, 0, 0, 1, 1, 1], [0], [0]>} : vector<2x8x8xf32>, vector<2x8x8xf32>, vector<2x8x8xf32> -> vector<2x8x8xf32>
    %cst_29 = arith.constant dense<0xFF800000> : vector<2x8xf32>
    %60 = vector.multi_reduction <maximumf>, %59, %cst_29 [2] : vector<2x8x8xf32> to vector<2x8xf32>
    %61 = vector.shape_cast %60 : vector<2x8xf32> to vector<2x8x1xf32>
    %62 = vector.broadcast %61 : vector<2x8x1xf32> to vector<2x8x8xf32>
    %63 = arith.subf %59, %62 : vector<2x8x8xf32>
    %64 = math.exp %63 : vector<2x8x8xf32>
    %cst_30 = arith.constant dense<0.000000e+00> : vector<2x8xf32>
    %65 = vector.multi_reduction <add>, %64, %cst_30 [2] : vector<2x8x8xf32> to vector<2x8xf32>
    %66 = vector.shape_cast %65 : vector<2x8xf32> to vector<2x8x1xf32>
    %67 = tpu.reciprocal %66 {approx = true} : vector<2x8x1xf32> -> vector<2x8x1xf32>
    %68 = vector.broadcast %67 : vector<2x8x1xf32> to vector<2x8x8xf32>
    %69 = arith.mulf %64, %68 : vector<2x8x8xf32>
    %cst_31 = arith.constant dense<0.000000e+00> : vector<2x8x8xf32>
    %70 = tpu.matmul %69, %58, %cst_31 {dimension_numbers = #tpu.dot_dimension_numbers<[2], [1], [1], [2], [0, 0, 0, 1, 1, 2], [0], [0]>} : vector<2x8x8xf32>, vector<2x8x8xf32>, vector<2x8x8xf32> -> vector<2x8x8xf32>
    %71 = vector.shape_cast %70 : vector<2x8x8xf32> to vector<16x8xf32>
    %c16 = arith.constant 16 : index
    %c0_32 = arith.constant 0 : index
    %72 = vector.load %arg7[%c16, %c0_32] : memref<32x32xf32, #tpu.memory_space<vmem>>, vector<8x32xf32>
    %cst_33 = arith.constant dense<0.000000e+00> : vector<16x32xf32>
    %73 = tpu.matmul %71, %72, %cst_33 {dimension_numbers = #tpu.dot_dimension_numbers<[1], [0], [0], [1], [0, 0, 1, 1], [], []>} : vector<16x8xf32>, vector<8x32xf32>, vector<16x32xf32> -> vector<16x32xf32>
    %74 = arith.addf %54, %73 : vector<16x32xf32>
    %75 = vector.extract_strided_slice %13 {offsets = [0, 24], sizes = [16, 8], strides = [1, 1]} : vector<16x32xf32> to vector<16x8xf32>
    %76 = vector.shape_cast %75 : vector<16x8xf32> to vector<2x8x8xf32>
    %77 = vector.extract_strided_slice %8 {offsets = [0, 24], sizes = [16, 8], strides = [1, 1]} : vector<16x32xf32> to vector<16x8xf32>
    %78 = vector.shape_cast %77 : vector<16x8xf32> to vector<2x8x8xf32>
    %cst_34 = arith.constant dense<0.000000e+00> : vector<2x8x8xf32>
    %79 = tpu.matmul %76, %78, %cst_34 {dimension_numbers = #tpu.dot_dimension_numbers<[2], [2], [1], [1], [0, 0, 0, 1, 1, 1], [0], [0]>} : vector<2x8x8xf32>, vector<2x8x8xf32>, vector<2x8x8xf32> -> vector<2x8x8xf32>
    %cst_35 = arith.constant dense<0xFF800000> : vector<2x8xf32>
    %80 = vector.multi_reduction <maximumf>, %79, %cst_35 [2] : vector<2x8x8xf32> to vector<2x8xf32>
    %81 = vector.shape_cast %80 : vector<2x8xf32> to vector<2x8x1xf32>
    %82 = vector.broadcast %81 : vector<2x8x1xf32> to vector<2x8x8xf32>
    %83 = arith.subf %79, %82 : vector<2x8x8xf32>
    %84 = math.exp %83 : vector<2x8x8xf32>
    %cst_36 = arith.constant dense<0.000000e+00> : vector<2x8xf32>
    %85 = vector.multi_reduction <add>, %84, %cst_36 [2] : vector<2x8x8xf32> to vector<2x8xf32>
    %86 = vector.shape_cast %85 : vector<2x8xf32> to vector<2x8x1xf32>
    %87 = tpu.reciprocal %86 {approx = true} : vector<2x8x1xf32> -> vector<2x8x1xf32>
    %88 = vector.broadcast %87 : vector<2x8x1xf32> to vector<2x8x8xf32>
    %89 = arith.mulf %84, %88 : vector<2x8x8xf32>
    %cst_37 = arith.constant dense<0.000000e+00> : vector<2x8x8xf32>
    %90 = tpu.matmul %89, %78, %cst_37 {dimension_numbers = #tpu.dot_dimension_numbers<[2], [1], [1], [2], [0, 0, 0, 1, 1, 2], [0], [0]>} : vector<2x8x8xf32>, vector<2x8x8xf32>, vector<2x8x8xf32> -> vector<2x8x8xf32>
    %91 = vector.shape_cast %90 : vector<2x8x8xf32> to vector<16x8xf32>
    %c24 = arith.constant 24 : index
    %c0_38 = arith.constant 0 : index
    %92 = vector.load %arg7[%c24, %c0_38] : memref<32x32xf32, #tpu.memory_space<vmem>>, vector<8x32xf32>
    %cst_39 = arith.constant dense<0.000000e+00> : vector<16x32xf32>
    %93 = tpu.matmul %91, %92, %cst_39 {dimension_numbers = #tpu.dot_dimension_numbers<[1], [0], [0], [1], [0, 0, 1, 1], [], []>} : vector<16x8xf32>, vector<8x32xf32>, vector<16x32xf32> -> vector<16x32xf32>
    %94 = arith.addf %74, %93 : vector<16x32xf32>
    %c0_40 = arith.constant 0 : index
    %c0_41 = arith.constant 0 : index
    %95 = vector.load %arg8[%c0_40, %c0_41] : memref<1x32xf32, #tpu.memory_space<vmem>>, vector<1x32xf32>
    %96 = vector.broadcast %95 : vector<1x32xf32> to vector<16x32xf32>
    %97 = arith.addf %94, %96 : vector<16x32xf32>
    %98 = vector.shape_cast %97 : vector<16x32xf32> to vector<2x8x32xf32>
    %c0_42 = arith.constant 0 : index
    %c0_43 = arith.constant 0 : index
    %c0_44 = arith.constant 0 : index
    %99 = vector.load %arg9[%c0_42, %c0_43, %c0_44] : memref<2x8x32xf32, #tpu.memory_space<vmem>>, vector<2x8x32xf32>
    tpu.vector_store %arg9[%c0_42, %c0_43, %c0_44], %98 {strides = array<i32>} : memref<2x8x32xf32, #tpu.memory_space<vmem>>, vector<2x8x32xf32>,
    return
  }
  func.func @transform_0(%arg0: i32) -> (i32, i32, i32) {
    %c0_i32 = arith.constant 0 : i32
    %c0_i32_0 = arith.constant 0 : i32
    %c0_i32_1 = arith.constant 0 : i32
    return %arg0, %c0_i32, %c0_i32_0 : i32, i32, i32
  }
  func.func @transform_1(%arg0: i32) -> (i32, i32, i32) {
    %c0_i32 = arith.constant 0 : i32
    %c0_i32_0 = arith.constant 0 : i32
    %c0_i32_1 = arith.constant 0 : i32
    return %arg0, %c0_i32, %c0_i32_0 : i32, i32, i32
  }
  func.func @transform_2(%arg0: i32) -> (i32, i32) {
    %c0_i32 = arith.constant 0 : i32
    %c0_i32_0 = arith.constant 0 : i32
    %c0_i32_1 = arith.constant 0 : i32
    return %c0_i32, %c0_i32_0 : i32, i32
  }
  func.func @transform_3(%arg0: i32) -> (i32, i32) {
    %c0_i32 = arith.constant 0 : i32
    %c0_i32_0 = arith.constant 0 : i32
    %c0_i32_1 = arith.constant 0 : i32
    return %c0_i32, %c0_i32_0 : i32, i32
  }
  func.func @transform_4(%arg0: i32) -> (i32, i32) {
    %c0_i32 = arith.constant 0 : i32
    %c0_i32_0 = arith.constant 0 : i32
    %c0_i32_1 = arith.constant 0 : i32
    return %c0_i32, %c0_i32_0 : i32, i32
  }
  func.func @transform_5(%arg0: i32) -> (i32, i32) {
    %c0_i32 = arith.constant 0 : i32
    %c0_i32_0 = arith.constant 0 : i32
    %c0_i32_1 = arith.constant 0 : i32
    return %c0_i32, %c0_i32_0 : i32, i32
  }
  func.func @transform_6(%arg0: i32) -> (i32, i32) {
    %c0_i32 = arith.constant 0 : i32
    %c0_i32_0 = arith.constant 0 : i32
    %c0_i32_1 = arith.constant 0 : i32
    return %c0_i32, %c0_i32_0 : i32, i32
  }
  func.func @transform_7(%arg0: i32) -> (i32, i32) {
    %c0_i32 = arith.constant 0 : i32
    %c0_i32_0 = arith.constant 0 : i32
    %c0_i32_1 = arith.constant 0 : i32
    return %c0_i32, %c0_i32_0 : i32, i32
  }
  func.func @transform_8(%arg0: i32) -> (i32, i32, i32) {
    %c0_i32 = arith.constant 0 : i32
    %c0_i32_0 = arith.constant 0 : i32
    %c0_i32_1 = arith.constant 0 : i32
    return %arg0, %c0_i32, %c0_i32_0 : i32, i32, i32
  }
}

</mosaic_0001>

<llo_original>
// kernel: tpu_custom_call.1
$region0: #{tpu_custom_call.1}
  #allocation0 [shape = 'u32[]', space=smem, size = 0x4, offset = 0x4, fixed_abs, tag = 'smem constant byte address 0x4 - core index']
  #allocation1 [shape = 'u32[144,128]{1,0:T(1,128)}', space=vmem, size = 0x12000, scoped, tag = 'internal scratch']
  %s0 = inlined_call_operand.hbm [shape: f32[2,8,32], index: 0, kind: input, shape index: {}]
  %s1 = inlined_call_operand.hbm [shape: f32[2,8,32], index: 1, kind: input, shape index: {}]
  %s2 = inlined_call_operand.hbm [shape: f32[32,32], index: 2, kind: input, shape index: {}]
  %s3 = inlined_call_operand.hbm [shape: f32[1,32], index: 3, kind: input, shape index: {}]
  %s4 = inlined_call_operand.hbm [shape: f32[32,32], index: 4, kind: input, shape index: {}]
  %s5 = inlined_call_operand.hbm [shape: f32[1,32], index: 5, kind: input, shape index: {}]
  %s6 = inlined_call_operand.hbm [shape: f32[32,32], index: 6, kind: input, shape index: {}]
  %s7 = inlined_call_operand.hbm [shape: f32[1,32], index: 7, kind: input, shape index: {}]
  %s8 = inlined_call_operand.hbm [shape: f32[2,8,32], index: 8, kind: output, shape index: {}]
  %s9 = sld [smem:[#allocation0]]
  $region74: #{tpu_custom_call.1} parent=0
    _
  %s11 = ssub.s32 1, %s9
  %s12 = scalar_select 0, %s11, %s9
  $region1: #{tpu_custom_call.1} parent=0
    #allocation2 [shape = 'u8[8192]{0}', space=vmem, size = 0x2000, scoped, tag = 'input window, operand 0, single buffered']
    #allocation3 [shape = 's32[1]{0}', space=sflag, size = 0x4, scoped, tag = 'scoped memory for tpu_custom_call.1']
    #allocation4 [shape = 's32[1]{0}', space=sflag, size = 0x4, scoped, tag = 'scoped memory for tpu_custom_call.1']
    #allocation5 [shape = 'u8[8192]{0}', space=vmem, size = 0x2000, scoped, tag = 'input window, operand 1, single buffered']
    #allocation6 [shape = 's32[1]{0}', space=sflag, size = 0x4, scoped, tag = 'scoped memory for tpu_custom_call.1']
    #allocation7 [shape = 'u8[16384]{0}', space=vmem, size = 0x4000, scoped, tag = 'input window, operand 2, single buffered']
    #allocation8 [shape = 'u8[512]{0}', space=vmem, size = 0x400, scoped, tag = 'input window, operand 3, single buffered']
    #allocation9 [shape = 's32[1]{0}', space=sflag, size = 0x4, scoped, tag = 'scoped memory for tpu_custom_call.1']
    #allocation10 [shape = 'u8[16384]{0}', space=vmem, size = 0x4000, scoped, tag = 'input window, operand 4, single buffered']
    #allocation11 [shape = 'u8[512]{0}', space=vmem, size = 0x400, scoped, tag = 'input window, operand 5, single buffered']
    #allocation12 [shape = 's32[1]{0}', space=sflag, size = 0x4, scoped, tag = 'scoped memory for tpu_custom_call.1']
    #allocation13 [shape = 'u8[16384]{0}', space=vmem, size = 0x4000, scoped, tag = 'input window, operand 6, single buffered']
    #allocation14 [shape = 'u8[512]{0}', space=vmem, size = 0x400, scoped, tag = 'input window, operand 7, single buffered']
    #allocation15 [shape = 's32[1]{0}', space=sflag, size = 0x4, scoped, tag = 'scoped memory for tpu_custom_call.1']
    #allocation16 [shape = 'u8[8192]{0}', space=vmem, size = 0x2000, scoped, tag = 'output window, operand 0, single buffered']
    %13 = vsyncpa [#allocation3], 0
    %14 = vsyncpa [#allocation6], 0
    %15 = vsyncpa [#allocation9], 0
    %16 = vsyncpa [#allocation12], 0
    %17 = vsyncpa [#allocation15], 0
    %18 = vsyncpa [#allocation4], 0
    // Predicated region
    $region2: #{tpu_custom_call.1} parent=1 // pred_check
      _
    $region3: #{tpu_custom_call.1} parent=1 // pred_check_branch
      %20 = sbr.rel (0) target = $region5
    $region4: #{tpu_custom_call.1} parent=1 // pred_region
      %s22 = ssub.s32 256, 256
      %23 = vsyncadd [#allocation3], %s22
      %s24 = sshll.u32 [#allocation2], 4
      %s25 = int_to_ptr.vmem [resolvable:$true] %s24
      %30 = dma.hbm_to_vmem [thread:$0]  %s0, 256, %s25, [#allocation3], 128, 128, 8
    $region5: #{tpu_custom_call.1} parent=1 // pred_fallthru
      _
    // Predicated region
    $region6: #{tpu_custom_call.1} parent=1 // pred_check
      _
    $region7: #{tpu_custom_call.1} parent=1 // pred_check_branch
      %32 = sbr.rel (0) target = $region9
    $region8: #{tpu_custom_call.1} parent=1 // pred_region
      %s34 = ssub.s32 256, 256
      %35 = vsyncadd [#allocation6], %s34
      %s36 = sshll.u32 [#allocation5], 4
      %s37 = int_to_ptr.vmem [resolvable:$true] %s36
      %42 = dma.hbm_to_vmem [thread:$0]  %s1, 256, %s37, [#allocation6], 128, 128, 8
    $region9: #{tpu_custom_call.1} parent=1 // pred_fallthru
      _
    // Predicated region
    $region10: #{tpu_custom_call.1} parent=1 // pred_check
      _
    $region11: #{tpu_custom_call.1} parent=1 // pred_check_branch
      %44 = sbr.rel (0) target = $region13
    $region12: #{tpu_custom_call.1} parent=1 // pred_region
      %s46 = ssub.s32 512, 512
      %47 = vsyncadd [#allocation6], %s46
      %s48 = sshll.u32 [#allocation7], 4
      %s49 = int_to_ptr.vmem [resolvable:$true] %s48
      %54 = dma.hbm_to_vmem [thread:$0]  %s2, 512, %s49, [#allocation6], 128, 128, 8
    $region13: #{tpu_custom_call.1} parent=1 // pred_fallthru
      _
    // Predicated region
    $region14: #{tpu_custom_call.1} parent=1 // pred_check
      _
    $region15: #{tpu_custom_call.1} parent=1 // pred_check_branch
      %56 = sbr.rel (0) target = $region17
    $region16: #{tpu_custom_call.1} parent=1 // pred_region
      %s58 = ssub.s32 16, 16
      %59 = vsyncadd [#allocation9], %s58
      %s61 = sshll.u32 [#allocation8], 4
      %s62 = int_to_ptr.vmem [resolvable:$true] %s61
      %64 = dma.hbm_to_vmem [thread:$0]  %s3, 16, %s62, [#allocation9]
    $region17: #{tpu_custom_call.1} parent=1 // pred_fallthru
      _
    // Predicated region
    $region18: #{tpu_custom_call.1} parent=1 // pred_check
      _
    $region19: #{tpu_custom_call.1} parent=1 // pred_check_branch
      %66 = sbr.rel (0) target = $region21
    $region20: #{tpu_custom_call.1} parent=1 // pred_region
      %s68 = ssub.s32 512, 512
      %69 = vsyncadd [#allocation9], %s68
      %s70 = sshll.u32 [#allocation10], 4
      %s71 = int_to_ptr.vmem [resolvable:$true] %s70
      %76 = dma.hbm_to_vmem [thread:$0]  %s4, 512, %s71, [#allocation9], 128, 128, 8
    $region21: #{tpu_custom_call.1} parent=1 // pred_fallthru
      _
    // Predicated region
    $region22: #{tpu_custom_call.1} parent=1 // pred_check
      _
    $region23: #{tpu_custom_call.1} parent=1 // pred_check_branch
      %78 = sbr.rel (0) target = $region25
    $region24: #{tpu_custom_call.1} parent=1 // pred_region
      %s80 = ssub.s32 16, 16
      %81 = vsyncadd [#allocation12], %s80
      %s83 = sshll.u32 [#allocation11], 4
      %s84 = int_to_ptr.vmem [resolvable:$true] %s83
      %86 = dma.hbm_to_vmem [thread:$0]  %s5, 16, %s84, [#allocation12]
    $region25: #{tpu_custom_call.1} parent=1 // pred_fallthru
      _
    // Predicated region
    $region26: #{tpu_custom_call.1} parent=1 // pred_check
      _
    $region27: #{tpu_custom_call.1} parent=1 // pred_check_branch
      %88 = sbr.rel (0) target = $region29
    $region28: #{tpu_custom_call.1} parent=1 // pred_region
      %s90 = ssub.s32 512, 512
      %91 = vsyncadd [#allocation12], %s90
      %s92 = sshll.u32 [#allocation13], 4
      %s93 = int_to_ptr.vmem [resolvable:$true] %s92
      %98 = dma.hbm_to_vmem [thread:$0]  %s6, 512, %s93, [#allocation12], 128, 128, 8
    $region29: #{tpu_custom_call.1} parent=1 // pred_fallthru
      _
    // Predicated region
    $region30: #{tpu_custom_call.1} parent=1 // pred_check
      _
    $region31: #{tpu_custom_call.1} parent=1 // pred_check_branch
      %100 = sbr.rel (0) target = $region33
    $region32: #{tpu_custom_call.1} parent=1 // pred_region
      %s102 = ssub.s32 16, 16
      %103 = vsyncadd [#allocation15], %s102
      %s105 = sshll.u32 [#allocation14], 4
      %s106 = int_to_ptr.vmem [resolvable:$true] %s105
      %108 = dma.hbm_to_vmem [thread:$0]  %s7, 16, %s106, [#allocation15]
    $region33: #{tpu_custom_call.1} parent=1 // pred_fallthru
      _
    // Predicated region
    $region34: #{tpu_custom_call.1} parent=1 // pred_check
      _
    $region35: #{tpu_custom_call.1} parent=1 // pred_check_branch
      %110 = sbr.rel (0) target = $region37
    $region36: #{tpu_custom_call.1} parent=1 // pred_region
      %111 = dma.done [#allocation3], 256
    $region37: #{tpu_custom_call.1} parent=1 // pred_fallthru
      _
    // Predicated region
    $region38: #{tpu_custom_call.1} parent=1 // pred_check
      _
    $region39: #{tpu_custom_call.1} parent=1 // pred_check_branch
      %113 = sbr.rel (0) target = $region41
    $region40: #{tpu_custom_call.1} parent=1 // pred_region
      %114 = dma.done [#allocation6], 256
    $region41: #{tpu_custom_call.1} parent=1 // pred_fallthru
      _
    // Predicated region
    $region42: #{tpu_custom_call.1} parent=1 // pred_check
      _
    $region43: #{tpu_custom_call.1} parent=1 // pred_check_branch
      %116 = sbr.rel (0) target = $region45
    $region44: #{tpu_custom_call.1} parent=1 // pred_region
      %117 = dma.done [#allocation6], 512
    $region45: #{tpu_custom_call.1} parent=1 // pred_fallthru
      _
    // Predicated region
    $region46: #{tpu_custom_call.1} parent=1 // pred_check
      _
    $region47: #{tpu_custom_call.1} parent=1 // pred_check_branch
      %119 = sbr.rel (0) target = $region49
    $region48: #{tpu_custom_call.1} parent=1 // pred_region
      %120 = dma.done [#allocation9], 16
    $region49: #{tpu_custom_call.1} parent=1 // pred_fallthru
      _
    // Predicated region
    $region50: #{tpu_custom_call.1} parent=1 // pred_check
      _
    $region51: #{tpu_custom_call.1} parent=1 // pred_check_branch
      %122 = sbr.rel (0) target = $region53
    $region52: #{tpu_custom_call.1} parent=1 // pred_region
      %123 = dma.done [#allocation9], 512
    $region53: #{tpu_custom_call.1} parent=1 // pred_fallthru
      _
    // Predicated region
    $region54: #{tpu_custom_call.1} parent=1 // pred_check
      _
    $region55: #{tpu_custom_call.1} parent=1 // pred_check_branch
      %125 = sbr.rel (0) target = $region57
    $region56: #{tpu_custom_call.1} parent=1 // pred_region
      %126 = dma.done [#allocation12], 16
    $region57: #{tpu_custom_call.1} parent=1 // pred_fallthru
      _
    // Predicated region
    $region58: #{tpu_custom_call.1} parent=1 // pred_check
      _
    $region59: #{tpu_custom_call.1} parent=1 // pred_check_branch
      %128 = sbr.rel (0) target = $region61
    $region60: #{tpu_custom_call.1} parent=1 // pred_region
      %129 = dma.done [#allocation12], 512
    $region61: #{tpu_custom_call.1} parent=1 // pred_fallthru
      _
    // Predicated region
    $region62: #{tpu_custom_call.1} parent=1 // pred_check
      _
    $region63: #{tpu_custom_call.1} parent=1 // pred_check_branch
      %131 = sbr.rel (0) target = $region65
    $region64: #{tpu_custom_call.1} parent=1 // pred_region
      %132 = dma.done [#allocation15], 16
    $region65: #{tpu_custom_call.1} parent=1 // pred_fallthru
      _
    %v133 = vld [vmem:[#allocation2] sm:$0xff]
    %v134 = vld [vmem:[#allocation2 + $0x8] sm:$0xff]
    %v135 = vld [vmem:[#allocation5] sm:$0xff]
    %v136 = vld [vmem:[#allocation5 + $0x8] sm:$0xff]
    %v137 = vld [vmem:[#allocation7] sm:$0xff]
    %v138 = vld [vmem:[#allocation7 + $0x8] sm:$0xff]
    %v139 = vld [vmem:[#allocation7 + $0x10] sm:$0xff]
    %v140 = vld [vmem:[#allocation7 + $0x18] sm:$0xff]
    %v141 = vld [vmem:[#allocation8] sm:$0x1]
    %v143 = vlaneseq
    %v144 = vshrl.u32 %v143, 7
    %v145 = vsub.s32 0, %v144
    %v146 = vrot.slane %v141, %v145
    %vm148 = vcmask 261120
    %v150 = vsel %vm148, %v133, 0
    %v153 = vsel %vm148, %v134, 0
    %155 = vmatprep.subr.mxu0 0.0
    %156 = vmatpush1.msra.mxu0 %v137
    %157 = vmatprep.subr.mxu0 0.0
    %158 = vmatpush1.msra.mxu0 %v138
    %159 = vmatprep.subr.mxu0 0.0
    %160 = vmatpush1.msra.mxu0 %v139
    %161 = vmatprep.subr.mxu0 0.0
    %162 = vmatpush1.msra.mxu0 %v140
    %163 = vmatprep.subr.mxu0 0.0
    %164 = vmatpush1.msra.mxu0 0.0
    %165 = vmatprep.subr.mxu0 0.0
    %166 = vmatpush1.msra.mxu0 0.0
    %167 = vmatprep.subr.mxu0 0.0
    %168 = vmatpush1.msra.mxu0 0.0
    %169 = vmatprep.subr.mxu0 0.0
    %170 = vmatpush1.msra.mxu0 0.0
    %171 = vmatprep.subr.mxu0 0.0
    %172 = vmatpush1.msra.mxu0 0.0
    %173 = vmatprep.subr.mxu0 0.0
    %174 = vmatpush1.msra.mxu0 0.0
    %175 = vmatprep.subr.mxu0 0.0
    %176 = vmatpush1.msra.mxu0 0.0
    %177 = vmatprep.subr.mxu0 0.0
    %178 = vmatpush1.msra.mxu0 0.0
    %179 = vmatprep.subr.mxu0 0.0
    %180 = vmatpush1.msra.mxu0 0.0
    %181 = vmatprep.subr.mxu0 0.0
    %182 = vmatpush1.msra.mxu0 0.0
    %183 = vmatprep.subr.mxu0 0.0
    %184 = vmatpush1.msra.mxu0 0.0
    %185 = vmatprep.subr.mxu0 0.0
    %186 = vmatpush1.msra.mxu0 0.0
    %187 = vmatprep.subr.mxu0 0.0
    %188 = vmatpush1.msra.mxu0 0.0
    %189 = vmatprep.subr.mxu0 0.0
    %190 = vmatpush1.msra.mxu0 0.0
    %191 = vmatprep.subr.mxu0 0.0
    %192 = vmatpush1.msra.mxu0 0.0
    %193 = vmatprep.subr.mxu0 0.0
    %194 = vmatpush1.msra.mxu0 0.0
    %195 = vmatprep.subr.mxu0 0.0
    %196 = vmatpush1.msra.mxu0 0.0
    %197 = vmatprep.subr.mxu0 0.0
    %198 = vmatpush1.msra.mxu0 0.0
    %199 = vmatprep.subr.mxu0 0.0
    %200 = vmatpush1.msra.mxu0 0.0
    %201 = vmatprep.subr.mxu0 0.0
    %202 = vmatpush1.msra.mxu0 0.0
    %203 = vmatprep.subr.mxu0 0.0
    %204 = vmatpush1.msra.mxu0 0.0
    %205 = vmatprep.subr.mxu0 0.0
    %206 = vmatpush1.msra.mxu0 0.0
    %207 = vmatprep.subr.mxu0 0.0
    %208 = vmatpush1.msra.mxu0 0.0
    %209 = vmatprep.subr.mxu0 0.0
    %210 = vmatpush1.msra.mxu0 0.0
    %211 = vmatprep.subr.mxu0 0.0
    %212 = vmatpush1.msra.mxu0 0.0
    %213 = vmatprep.subr.mxu0 0.0
    %214 = vmatpush1.msra.mxu0 0.0
    %215 = vmatprep.subr.mxu0 0.0
    %216 = vmatpush1.msra.mxu0 0.0
    %217 = vmatprep.subr.mxu0 0.0
    %218 = vmatpush1.msra.mxu0 0.0
    %219 = vmatprep.mubr.f32.mxu0 0.0
    %220 = vmatmul.mubr.f32.gmra.mrb[0].mxu0 %v150
    %v221 = vpop.f32.mrb[0].mxu0
    %v222 = vadd.f32 %v146, %v221
    %v223 = vpop.f32.mrb[0].mxu0
    %224 = vmatprep.mubr.f32.mxu0 0.0
    %225 = vmatmul.mubr.f32.gmra.mrb[0].mxu0 %v153
    %v226 = vpop.f32.mrb[0].mxu0
    %v227 = vadd.f32 %v146, %v226
    %v228 = vpop.f32.mrb[0].mxu0
    %229 = vdwg.mxu0
    %v230 = vld [vmem:[#allocation10] sm:$0xff]
    %v231 = vld [vmem:[#allocation10 + $0x8] sm:$0xff]
    %v232 = vld [vmem:[#allocation10 + $0x10] sm:$0xff]
    %v233 = vld [vmem:[#allocation10 + $0x18] sm:$0xff]
    %v234 = vld [vmem:[#allocation11] sm:$0x1]
    %v236 = vlaneseq
    %v237 = vshrl.u32 %v236, 7
    %v238 = vsub.s32 0, %v237
    %v239 = vrot.slane %v234, %v238
    %v242 = vsel %vm148, %v135, 0
    %v245 = vsel %vm148, %v136, 0
    %247 = vmatprep.subr.mxu0 0.0
    %248 = vmatpush1.msra.mxu0 %v230
    %249 = vmatprep.subr.mxu0 0.0
    %250 = vmatpush1.msra.mxu0 %v231
    %251 = vmatprep.subr.mxu0 0.0
    %252 = vmatpush1.msra.mxu0 %v232
    %253 = vmatprep.subr.mxu0 0.0
    %254 = vmatpush1.msra.mxu0 %v233
    %255 = vmatprep.subr.mxu0 0.0
    %256 = vmatpush1.msra.mxu0 0.0
    %257 = vmatprep.subr.mxu0 0.0
    %258 = vmatpush1.msra.mxu0 0.0
    %259 = vmatprep.subr.mxu0 0.0
    %260 = vmatpush1.msra.mxu0 0.0
    %261 = vmatprep.subr.mxu0 0.0
    %262 = vmatpush1.msra.mxu0 0.0
    %263 = vmatprep.subr.mxu0 0.0
    %264 = vmatpush1.msra.mxu0 0.0
    %265 = vmatprep.subr.mxu0 0.0
    %266 = vmatpush1.msra.mxu0 0.0
    %267 = vmatprep.subr.mxu0 0.0
    %268 = vmatpush1.msra.mxu0 0.0
    %269 = vmatprep.subr.mxu0 0.0
    %270 = vmatpush1.msra.mxu0 0.0
    %271 = vmatprep.subr.mxu0 0.0
    %272 = vmatpush1.msra.mxu0 0.0
    %273 = vmatprep.subr.mxu0 0.0
    %274 = vmatpush1.msra.mxu0 0.0
    %275 = vmatprep.subr.mxu0 0.0
    %276 = vmatpush1.msra.mxu0 0.0
    %277 = vmatprep.subr.mxu0 0.0
    %278 = vmatpush1.msra.mxu0 0.0
    %279 = vmatprep.subr.mxu0 0.0
    %280 = vmatpush1.msra.mxu0 0.0
    %281 = vmatprep.subr.mxu0 0.0
    %282 = vmatpush1.msra.mxu0 0.0
    %283 = vmatprep.subr.mxu0 0.0
    %284 = vmatpush1.msra.mxu0 0.0
    %285 = vmatprep.subr.mxu0 0.0
    %286 = vmatpush1.msra.mxu0 0.0
    %287 = vmatprep.subr.mxu0 0.0
    %288 = vmatpush1.msra.mxu0 0.0
    %289 = vmatprep.subr.mxu0 0.0
    %290 = vmatpush1.msra.mxu0 0.0
    %291 = vmatprep.subr.mxu0 0.0
    %292 = vmatpush1.msra.mxu0 0.0
    %293 = vmatprep.subr.mxu0 0.0
    %294 = vmatpush1.msra.mxu0 0.0
    %295 = vmatprep.subr.mxu0 0.0
    %296 = vmatpush1.msra.mxu0 0.0
    %297 = vmatprep.subr.mxu0 0.0
    %298 = vmatpush1.msra.mxu0 0.0
    %299 = vmatprep.subr.mxu0 0.0
    %300 = vmatpush1.msra.mxu0 0.0
    %301 = vmatprep.subr.mxu0 0.0
    %302 = vmatpush1.msra.mxu0 0.0
    %303 = vmatprep.subr.mxu0 0.0
    %304 = vmatpush1.msra.mxu0 0.0
    %305 = vmatprep.subr.mxu0 0.0
    %306 = vmatpush1.msra.mxu0 0.0
    %307 = vmatprep.subr.mxu0 0.0
    %308 = vmatpush1.msra.mxu0 0.0
    %309 = vmatprep.subr.mxu0 0.0
    %310 = vmatpush1.msra.mxu0 0.0
    %311 = vmatprep.mubr.f32.mxu0 0.0
    %312 = vmatmul.mubr.f32.gmra.mrb[0].mxu0 %v242
    %v313 = vpop.f32.mrb[0].mxu0
    %v314 = vadd.f32 %v239, %v313
    %v315 = vpop.f32.mrb[0].mxu0
    %316 = vmatprep.mubr.f32.mxu0 0.0
    %317 = vmatmul.mubr.f32.gmra.mrb[0].mxu0 %v245
    %v318 = vpop.f32.mrb[0].mxu0
    %v319 = vadd.f32 %v239, %v318
    %v320 = vpop.f32.mrb[0].mxu0
    %321 = vdwg.mxu0
    %vm322 = vcmask 64512
    %v324 = vsel %vm322, %v314, 0
    %v327 = vsel %vm322, %v222, 0
    %329 = vmatprep.subr.mxu0 0.0
    %330 = vmatpush1.xpose.msra.mxu0 %v327
    %331 = vmatprep.subr.mxu0 0.0
    %332 = vmatpush1.xpose.msra.mxu0 0.0
    %333 = vmatprep.subr.mxu0 0.0
    %334 = vmatpush1.xpose.msra.mxu0 0.0
    %335 = vmatprep.subr.mxu0 0.0
    %336 = vmatpush1.xpose.msra.mxu0 0.0
    %337 = vmatprep.subr.mxu0 0.0
    %338 = vmatpush1.xpose.msra.mxu0 0.0
    %339 = vmatprep.subr.mxu0 0.0
    %340 = vmatpush1.xpose.msra.mxu0 0.0
    %341 = vmatprep.subr.mxu0 0.0
    %342 = vmatpush1.xpose.msra.mxu0 0.0
    %343 = vmatprep.subr.mxu0 0.0
    %344 = vmatpush1.xpose.msra.mxu0 0.0
    %345 = vmatprep.subr.mxu0 0.0
    %346 = vmatpush1.xpose.msra.mxu0 0.0
    %347 = vmatprep.subr.mxu0 0.0
    %348 = vmatpush1.xpose.msra.mxu0 0.0
    %349 = vmatprep.subr.mxu0 0.0
    %350 = vmatpush1.xpose.msra.mxu0 0.0
    %351 = vmatprep.subr.mxu0 0.0
    %352 = vmatpush1.xpose.msra.mxu0 0.0
    %353 = vmatprep.subr.mxu0 0.0
    %354 = vmatpush1.xpose.msra.mxu0 0.0
    %355 = vmatprep.subr.mxu0 0.0
    %356 = vmatpush1.xpose.msra.mxu0 0.0
    %357 = vmatprep.subr.mxu0 0.0
    %358 = vmatpush1.xpose.msra.mxu0 0.0
    %359 = vmatprep.subr.mxu0 0.0
    %360 = vmatpush1.xpose.msra.mxu0 0.0
    %361 = vmatprep.subr.mxu0 0.0
    %362 = vmatpush1.xpose.msra.mxu0 0.0
    %363 = vmatprep.subr.mxu0 0.0
    %364 = vmatpush1.xpose.msra.mxu0 0.0
    %365 = vmatprep.subr.mxu0 0.0
    %366 = vmatpush1.xpose.msra.mxu0 0.0
    %367 = vmatprep.subr.mxu0 0.0
    %368 = vmatpush1.xpose.msra.mxu0 0.0
    %369 = vmatprep.subr.mxu0 0.0
    %370 = vmatpush1.xpose.msra.mxu0 0.0
    %371 = vmatprep.subr.mxu0 0.0
    %372 = vmatpush1.xpose.msra.mxu0 0.0
    %373 = vmatprep.subr.mxu0 0.0
    %374 = vmatpush1.xpose.msra.mxu0 0.0
    %375 = vmatprep.subr.mxu0 0.0
    %376 = vmatpush1.xpose.msra.mxu0 0.0
    %377 = vmatprep.subr.mxu0 0.0
    %378 = vmatpush1.xpose.msra.mxu0 0.0
    %379 = vmatprep.subr.mxu0 0.0
    %380 = vmatpush1.xpose.msra.mxu0 0.0
    %381 = vmatprep.subr.mxu0 0.0
    %382 = vmatpush1.xpose.msra.mxu0 0.0
    %383 = vmatprep.subr.mxu0 0.0
    %384 = vmatpush1.xpose.msra.mxu0 0.0
    %385 = vmatprep.subr.mxu0 0.0
    %386 = vmatpush1.xpose.msra.mxu0 0.0
    %387 = vmatprep.subr.mxu0 0.0
    %388 = vmatpush1.xpose.msra.mxu0 0.0
    %389 = vmatprep.subr.mxu0 0.0
    %390 = vmatpush1.xpose.msra.mxu0 0.0
    %391 = vmatprep.subr.mxu0 0.0
    %392 = vmatpush1.xpose.msra.mxu0 0.0
    %393 = vmatprep.mubr.f32.mxu0 0.0
    %394 = vmatmul.mubr.f32.gmra.mrb[0].mxu0 %v324
    %v395 = vpop.f32.mrb[0].mxu0
    %v396 = vadd.f32 0.0, %v395
    %v397 = vpop.f32.mrb[0].mxu0
    %398 = vdwg.mxu0
    %v400 = vsel %vm322, %v319, 0
    %v403 = vsel %vm322, %v227, 0
    %405 = vmatprep.subr.mxu0 0.0
    %406 = vmatpush1.xpose.msra.mxu0 %v403
    %407 = vmatprep.subr.mxu0 0.0
    %408 = vmatpush1.xpose.msra.mxu0 0.0
    %409 = vmatprep.subr.mxu0 0.0
    %410 = vmatpush1.xpose.msra.mxu0 0.0
    %411 = vmatprep.subr.mxu0 0.0
    %412 = vmatpush1.xpose.msra.mxu0 0.0
    %413 = vmatprep.subr.mxu0 0.0
    %414 = vmatpush1.xpose.msra.mxu0 0.0
    %415 = vmatprep.subr.mxu0 0.0
    %416 = vmatpush1.xpose.msra.mxu0 0.0
    %417 = vmatprep.subr.mxu0 0.0
    %418 = vmatpush1.xpose.msra.mxu0 0.0
    %419 = vmatprep.subr.mxu0 0.0
    %420 = vmatpush1.xpose.msra.mxu0 0.0
    %421 = vmatprep.subr.mxu0 0.0
    %422 = vmatpush1.xpose.msra.mxu0 0.0
    %423 = vmatprep.subr.mxu0 0.0
    %424 = vmatpush1.xpose.msra.mxu0 0.0
    %425 = vmatprep.subr.mxu0 0.0
    %426 = vmatpush1.xpose.msra.mxu0 0.0
    %427 = vmatprep.subr.mxu0 0.0
    %428 = vmatpush1.xpose.msra.mxu0 0.0
    %429 = vmatprep.subr.mxu0 0.0
    %430 = vmatpush1.xpose.msra.mxu0 0.0
    %431 = vmatprep.subr.mxu0 0.0
    %432 = vmatpush1.xpose.msra.mxu0 0.0
    %433 = vmatprep.subr.mxu0 0.0
    %434 = vmatpush1.xpose.msra.mxu0 0.0
    %435 = vmatprep.subr.mxu0 0.0
    %436 = vmatpush1.xpose.msra.mxu0 0.0
    %437 = vmatprep.subr.mxu0 0.0
    %438 = vmatpush1.xpose.msra.mxu0 0.0
    %439 = vmatprep.subr.mxu0 0.0
    %440 = vmatpush1.xpose.msra.mxu0 0.0
    %441 = vmatprep.subr.mxu0 0.0
    %442 = vmatpush1.xpose.msra.mxu0 0.0
    %443 = vmatprep.subr.mxu0 0.0
    %444 = vmatpush1.xpose.msra.mxu0 0.0
    %445 = vmatprep.subr.mxu0 0.0
    %446 = vmatpush1.xpose.msra.mxu0 0.0
    %447 = vmatprep.subr.mxu0 0.0
    %448 = vmatpush1.xpose.msra.mxu0 0.0
    %449 = vmatprep.subr.mxu0 0.0
    %450 = vmatpush1.xpose.msra.mxu0 0.0
    %451 = vmatprep.subr.mxu0 0.0
    %452 = vmatpush1.xpose.msra.mxu0 0.0
    %453 = vmatprep.subr.mxu0 0.0
    %454 = vmatpush1.xpose.msra.mxu0 0.0
    %455 = vmatprep.subr.mxu0 0.0
    %456 = vmatpush1.xpose.msra.mxu0 0.0
    %457 = vmatprep.subr.mxu0 0.0
    %458 = vmatpush1.xpose.msra.mxu0 0.0
    %459 = vmatprep.subr.mxu0 0.0
    %460 = vmatpush1.xpose.msra.mxu0 0.0
    %461 = vmatprep.subr.mxu0 0.0
    %462 = vmatpush1.xpose.msra.mxu0 0.0
    %463 = vmatprep.subr.mxu0 0.0
    %464 = vmatpush1.xpose.msra.mxu0 0.0
    %465 = vmatprep.subr.mxu0 0.0
    %466 = vmatpush1.xpose.msra.mxu0 0.0
    %467 = vmatprep.subr.mxu0 0.0
    %468 = vmatpush1.xpose.msra.mxu0 0.0
    %469 = vmatprep.mubr.f32.mxu0 0.0
    %470 = vmatmul.mubr.f32.gmra.mrb[0].mxu0 %v400
    %v471 = vpop.f32.mrb[0].mxu0
    %v472 = vadd.f32 0.0, %v471
    %v473 = vpop.f32.mrb[0].mxu0
    %474 = vdwg.mxu0
    %v475 = vsel %vm322, %v396, -inf
    %476 = vmax.xlane.f32.xlu0 %v475
    %v477 = vpop.xlane.xlu0 %476
    %v478 = vsel %vm322, %v472, -inf
    %479 = vmax.xlane.f32.xlu0 %v478
    %v480 = vpop.xlane.xlu0 %479
    %v481 = vsub.f32 %v396, %v477
    %v482 = vsub.f32 %v472, %v480
    %v483 = vmul.f32 %v481, 1.442695
    %v484 = vpow.pop %v483
    %v485 = vmul.f32 %v482, 1.442695
    %v486 = vpow.pop %v485
    %v487 = vsel %vm322, %v484, 0.0
    %488 = vadd.xlane.f32.xlu0 %v487
    %v489 = vpop.xlane.xlu0 %488
    %v490 = vsel %vm322, %v486, 0.0
    %491 = vadd.xlane.f32.xlu0 %v490
    %v492 = vpop.xlane.xlu0 %491
    %v493 = vrcp.pop %v489
    %v494 = vrcp.pop %v492
    %v495 = vmul.f32 %v484, %v493
    %v496 = vmul.f32 %v486, %v494
    %v498 = vsel %vm322, %v495, 0
    %500 = vmatprep.subr.mxu0 0.0
    %501 = vmatpush1.msra.mxu0 %v222
    %502 = vmatprep.subr.mxu0 0.0
    %503 = vmatpush1.msra.mxu0 0.0
    %504 = vmatprep.subr.mxu0 0.0
    %505 = vmatpush1.msra.mxu0 0.0
    %506 = vmatprep.subr.mxu0 0.0
    %507 = vmatpush1.msra.mxu0 0.0
    %508 = vmatprep.subr.mxu0 0.0
    %509 = vmatpush1.msra.mxu0 0.0
    %510 = vmatprep.subr.mxu0 0.0
    %511 = vmatpush1.msra.mxu0 0.0
    %512 = vmatprep.subr.mxu0 0.0
    %513 = vmatpush1.msra.mxu0 0.0
    %514 = vmatprep.subr.mxu0 0.0
    %515 = vmatpush1.msra.mxu0 0.0
    %516 = vmatprep.subr.mxu0 0.0
    %517 = vmatpush1.msra.mxu0 0.0
    %518 = vmatprep.subr.mxu0 0.0
    %519 = vmatpush1.msra.mxu0 0.0
    %520 = vmatprep.subr.mxu0 0.0
    %521 = vmatpush1.msra.mxu0 0.0
    %522 = vmatprep.subr.mxu0 0.0
    %523 = vmatpush1.msra.mxu0 0.0
    %524 = vmatprep.subr.mxu0 0.0
    %525 = vmatpush1.msra.mxu0 0.0
    %526 = vmatprep.subr.mxu0 0.0
    %527 = vmatpush1.msra.mxu0 0.0
    %528 = vmatprep.subr.mxu0 0.0
    %529 = vmatpush1.msra.mxu0 0.0
    %530 = vmatprep.subr.mxu0 0.0
    %531 = vmatpush1.msra.mxu0 0.0
    %532 = vmatprep.subr.mxu0 0.0
    %533 = vmatpush1.msra.mxu0 0.0
    %534 = vmatprep.subr.mxu0 0.0
    %535 = vmatpush1.msra.mxu0 0.0
    %536 = vmatprep.subr.mxu0 0.0
    %537 = vmatpush1.msra.mxu0 0.0
    %538 = vmatprep.subr.mxu0 0.0
    %539 = vmatpush1.msra.mxu0 0.0
    %540 = vmatprep.subr.mxu0 0.0
    %541 = vmatpush1.msra.mxu0 0.0
    %542 = vmatprep.subr.mxu0 0.0
    %543 = vmatpush1.msra.mxu0 0.0
    %544 = vmatprep.subr.mxu0 0.0
    %545 = vmatpush1.msra.mxu0 0.0
    %546 = vmatprep.subr.mxu0 0.0
    %547 = vmatpush1.msra.mxu0 0.0
    %548 = vmatprep.subr.mxu0 0.0
    %549 = vmatpush1.msra.mxu0 0.0
    %550 = vmatprep.subr.mxu0 0.0
    %551 = vmatpush1.msra.mxu0 0.0
    %552 = vmatprep.subr.mxu0 0.0
    %553 = vmatpush1.msra.mxu0 0.0
    %554 = vmatprep.subr.mxu0 0.0
    %555 = vmatpush1.msra.mxu0 0.0
    %556 = vmatprep.subr.mxu0 0.0
    %557 = vmatpush1.msra.mxu0 0.0
    %558 = vmatprep.subr.mxu0 0.0
    %559 = vmatpush1.msra.mxu0 0.0
    %560 = vmatprep.subr.mxu0 0.0
    %561 = vmatpush1.msra.mxu0 0.0
    %562 = vmatprep.subr.mxu0 0.0
    %563 = vmatpush1.msra.mxu0 0.0
    %564 = vmatprep.mubr.f32.mxu0 0.0
    %565 = vmatmul.mubr.f32.gmra.mrb[0].mxu0 %v498
    %v566 = vpop.f32.mrb[0].mxu0
    %v567 = vadd.f32 0.0, %v566
    %v568 = vpop.f32.mrb[0].mxu0
    %569 = vdwg.mxu0
    %v571 = vsel %vm322, %v496, 0
    %573 = vmatprep.subr.mxu0 0.0
    %574 = vmatpush1.msra.mxu0 %v227
    %575 = vmatprep.subr.mxu0 0.0
    %576 = vmatpush1.msra.mxu0 0.0
    %577 = vmatprep.subr.mxu0 0.0
    %578 = vmatpush1.msra.mxu0 0.0
    %579 = vmatprep.subr.mxu0 0.0
    %580 = vmatpush1.msra.mxu0 0.0
    %581 = vmatprep.subr.mxu0 0.0
    %582 = vmatpush1.msra.mxu0 0.0
    %583 = vmatprep.subr.mxu0 0.0
    %584 = vmatpush1.msra.mxu0 0.0
    %585 = vmatprep.subr.mxu0 0.0
    %586 = vmatpush1.msra.mxu0 0.0
    %587 = vmatprep.subr.mxu0 0.0
    %588 = vmatpush1.msra.mxu0 0.0
    %589 = vmatprep.subr.mxu0 0.0
    %590 = vmatpush1.msra.mxu0 0.0
    %591 = vmatprep.subr.mxu0 0.0
    %592 = vmatpush1.msra.mxu0 0.0
    %593 = vmatprep.subr.mxu0 0.0
    %594 = vmatpush1.msra.mxu0 0.0
    %595 = vmatprep.subr.mxu0 0.0
    %596 = vmatpush1.msra.mxu0 0.0
    %597 = vmatprep.subr.mxu0 0.0
    %598 = vmatpush1.msra.mxu0 0.0
    %599 = vmatprep.subr.mxu0 0.0
    %600 = vmatpush1.msra.mxu0 0.0
    %601 = vmatprep.subr.mxu0 0.0
    %602 = vmatpush1.msra.mxu0 0.0
    %603 = vmatprep.subr.mxu0 0.0
    %604 = vmatpush1.msra.mxu0 0.0
    %605 = vmatprep.subr.mxu0 0.0
    %606 = vmatpush1.msra.mxu0 0.0
    %607 = vmatprep.subr.mxu0 0.0
    %608 = vmatpush1.msra.mxu0 0.0
    %609 = vmatprep.subr.mxu0 0.0
    %610 = vmatpush1.msra.mxu0 0.0
    %611 = vmatprep.subr.mxu0 0.0
    %612 = vmatpush1.msra.mxu0 0.0
    %613 = vmatprep.subr.mxu0 0.0
    %614 = vmatpush1.msra.mxu0 0.0
    %615 = vmatprep.subr.mxu0 0.0
    %616 = vmatpush1.msra.mxu0 0.0
    %617 = vmatprep.subr.mxu0 0.0
    %618 = vmatpush1.msra.mxu0 0.0
    %619 = vmatprep.subr.mxu0 0.0
    %620 = vmatpush1.msra.mxu0 0.0
    %621 = vmatprep.subr.mxu0 0.0
    %622 = vmatpush1.msra.mxu0 0.0
    %623 = vmatprep.subr.mxu0 0.0
    %624 = vmatpush1.msra.mxu0 0.0
    %625 = vmatprep.subr.mxu0 0.0
    %626 = vmatpush1.msra.mxu0 0.0
    %627 = vmatprep.subr.mxu0 0.0
    %628 = vmatpush1.msra.mxu0 0.0
    %629 = vmatprep.subr.mxu0 0.0
    %630 = vmatpush1.msra.mxu0 0.0
    %631 = vmatprep.subr.mxu0 0.0
    %632 = vmatpush1.msra.mxu0 0.0
    %633 = vmatprep.subr.mxu0 0.0
    %634 = vmatpush1.msra.mxu0 0.0
    %635 = vmatprep.subr.mxu0 0.0
    %636 = vmatpush1.msra.mxu0 0.0
    %637 = vmatprep.mubr.f32.mxu0 0.0
    %638 = vmatmul.mubr.f32.gmra.mrb[0].mxu0 %v571
    %v639 = vpop.f32.mrb[0].mxu0
    %v640 = vadd.f32 0.0, %v639
    %v641 = vpop.f32.mrb[0].mxu0
    %642 = vdwg.mxu0
    %v643 = vld [vmem:[#allocation13] sm:$0xff]
    %644 = vrot.lane.b32.xlu0 %v314, 120
    %v645 = vpop.permute.xlu0 %644
    %646 = vrot.lane.b32.xlu0 %v222, 120
    %v647 = vpop.permute.xlu0 %646
    %v648 = vsel %vm322, %v645, 0
    %v650 = vsel %vm322, %v647, 0
    %652 = vmatprep.subr.mxu0 0.0
    %653 = vmatpush1.xpose.msra.mxu0 %v650
    %654 = vmatprep.subr.mxu0 0.0
    %655 = vmatpush1.xpose.msra.mxu0 0.0
    %656 = vmatprep.subr.mxu0 0.0
    %657 = vmatpush1.xpose.msra.mxu0 0.0
    %658 = vmatprep.subr.mxu0 0.0
    %659 = vmatpush1.xpose.msra.mxu0 0.0
    %660 = vmatprep.subr.mxu0 0.0
    %661 = vmatpush1.xpose.msra.mxu0 0.0
    %662 = vmatprep.subr.mxu0 0.0
    %663 = vmatpush1.xpose.msra.mxu0 0.0
    %664 = vmatprep.subr.mxu0 0.0
    %665 = vmatpush1.xpose.msra.mxu0 0.0
    %666 = vmatprep.subr.mxu0 0.0
    %667 = vmatpush1.xpose.msra.mxu0 0.0
    %668 = vmatprep.subr.mxu0 0.0
    %669 = vmatpush1.xpose.msra.mxu0 0.0
    %670 = vmatprep.subr.mxu0 0.0
    %671 = vmatpush1.xpose.msra.mxu0 0.0
    %672 = vmatprep.subr.mxu0 0.0
    %673 = vmatpush1.xpose.msra.mxu0 0.0
    %674 = vmatprep.subr.mxu0 0.0
    %675 = vmatpush1.xpose.msra.mxu0 0.0
    %676 = vmatprep.subr.mxu0 0.0
    %677 = vmatpush1.xpose.msra.mxu0 0.0
    %678 = vmatprep.subr.mxu0 0.0
    %679 = vmatpush1.xpose.msra.mxu0 0.0
    %680 = vmatprep.subr.mxu0 0.0
    %681 = vmatpush1.xpose.msra.mxu0 0.0
    %682 = vmatprep.subr.mxu0 0.0
    %683 = vmatpush1.xpose.msra.mxu0 0.0
    %684 = vmatprep.subr.mxu0 0.0
    %685 = vmatpush1.xpose.msra.mxu0 0.0
    %686 = vmatprep.subr.mxu0 0.0
    %687 = vmatpush1.xpose.msra.mxu0 0.0
    %688 = vmatprep.subr.mxu0 0.0
    %689 = vmatpush1.xpose.msra.mxu0 0.0
    %690 = vmatprep.subr.mxu0 0.0
    %691 = vmatpush1.xpose.msra.mxu0 0.0
    %692 = vmatprep.subr.mxu0 0.0
    %693 = vmatpush1.xpose.msra.mxu0 0.0
    %694 = vmatprep.subr.mxu0 0.0
    %695 = vmatpush1.xpose.msra.mxu0 0.0
    %696 = vmatprep.subr.mxu0 0.0
    %697 = vmatpush1.xpose.msra.mxu0 0.0
    %698 = vmatprep.subr.mxu0 0.0
    %699 = vmatpush1.xpose.msra.mxu0 0.0
    %700 = vmatprep.subr.mxu0 0.0
    %701 = vmatpush1.xpose.msra.mxu0 0.0
    %702 = vmatprep.subr.mxu0 0.0
    %703 = vmatpush1.xpose.msra.mxu0 0.0
    %704 = vmatprep.subr.mxu0 0.0
    %705 = vmatpush1.xpose.msra.mxu0 0.0
    %706 = vmatprep.subr.mxu0 0.0
    %707 = vmatpush1.xpose.msra.mxu0 0.0
    %708 = vmatprep.subr.mxu0 0.0
    %709 = vmatpush1.xpose.msra.mxu0 0.0
    %710 = vmatprep.subr.mxu0 0.0
    %711 = vmatpush1.xpose.msra.mxu0 0.0
    %712 = vmatprep.subr.mxu0 0.0
    %713 = vmatpush1.xpose.msra.mxu0 0.0
    %714 = vmatprep.subr.mxu0 0.0
    %715 = vmatpush1.xpose.msra.mxu0 0.0
    %716 = vmatprep.mubr.f32.mxu0 0.0
    %717 = vmatmul.mubr.f32.gmra.mrb[0].mxu0 %v648
    %v718 = vpop.f32.mrb[0].mxu0
    %v719 = vadd.f32 0.0, %v718
    %v720 = vpop.f32.mrb[0].mxu0
    %721 = vdwg.mxu0
    %722 = vrot.lane.b32.xlu0 %v319, 120
    %v723 = vpop.permute.xlu0 %722
    %724 = vrot.lane.b32.xlu0 %v227, 120
    %v725 = vpop.permute.xlu0 %724
    %v726 = vsel %vm322, %v723, 0
    %v728 = vsel %vm322, %v725, 0
    %730 = vmatprep.subr.mxu0 0.0
    %731 = vmatpush1.xpose.msra.mxu0 %v728
    %732 = vmatprep.subr.mxu0 0.0
    %733 = vmatpush1.xpose.msra.mxu0 0.0
    %734 = vmatprep.subr.mxu0 0.0
    %735 = vmatpush1.xpose.msra.mxu0 0.0
    %736 = vmatprep.subr.mxu0 0.0
    %737 = vmatpush1.xpose.msra.mxu0 0.0
    %738 = vmatprep.subr.mxu0 0.0
    %739 = vmatpush1.xpose.msra.mxu0 0.0
    %740 = vmatprep.subr.mxu0 0.0
    %741 = vmatpush1.xpose.msra.mxu0 0.0
    %742 = vmatprep.subr.mxu0 0.0
    %743 = vmatpush1.xpose.msra.mxu0 0.0
    %744 = vmatprep.subr.mxu0 0.0
    %745 = vmatpush1.xpose.msra.mxu0 0.0
    %746 = vmatprep.subr.mxu0 0.0
    %747 = vmatpush1.xpose.msra.mxu0 0.0
    %748 = vmatprep.subr.mxu0 0.0
    %749 = vmatpush1.xpose.msra.mxu0 0.0
    %750 = vmatprep.subr.mxu0 0.0
    %751 = vmatpush1.xpose.msra.mxu0 0.0
    %752 = vmatprep.subr.mxu0 0.0
    %753 = vmatpush1.xpose.msra.mxu0 0.0
    %754 = vmatprep.subr.mxu0 0.0
    %755 = vmatpush1.xpose.msra.mxu0 0.0
    %756 = vmatprep.subr.mxu0 0.0
    %757 = vmatpush1.xpose.msra.mxu0 0.0
    %758 = vmatprep.subr.mxu0 0.0
    %759 = vmatpush1.xpose.msra.mxu0 0.0
    %760 = vmatprep.subr.mxu0 0.0
    %761 = vmatpush1.xpose.msra.mxu0 0.0
    %762 = vmatprep.subr.mxu0 0.0
    %763 = vmatpush1.xpose.msra.mxu0 0.0
    %764 = vmatprep.subr.mxu0 0.0
    %765 = vmatpush1.xpose.msra.mxu0 0.0
    %766 = vmatprep.subr.mxu0 0.0
    %767 = vmatpush1.xpose.msra.mxu0 0.0
    %768 = vmatprep.subr.mxu0 0.0
    %769 = vmatpush1.xpose.msra.mxu0 0.0
    %770 = vmatprep.subr.mxu0 0.0
    %771 = vmatpush1.xpose.msra.mxu0 0.0
    %772 = vmatprep.subr.mxu0 0.0
    %773 = vmatpush1.xpose.msra.mxu0 0.0
    %774 = vmatprep.subr.mxu0 0.0
    %775 = vmatpush1.xpose.msra.mxu0 0.0
    %776 = vmatprep.subr.mxu0 0.0
    %777 = vmatpush1.xpose.msra.mxu0 0.0
    %778 = vmatprep.subr.mxu0 0.0
    %779 = vmatpush1.xpose.msra.mxu0 0.0
    %780 = vmatprep.subr.mxu0 0.0
    %781 = vmatpush1.xpose.msra.mxu0 0.0
    %782 = vmatprep.subr.mxu0 0.0
    %783 = vmatpush1.xpose.msra.mxu0 0.0
    %784 = vmatprep.subr.mxu0 0.0
    %785 = vmatpush1.xpose.msra.mxu0 0.0
    %786 = vmatprep.subr.mxu0 0.0
    %787 = vmatpush1.xpose.msra.mxu0 0.0
    %788 = vmatprep.subr.mxu0 0.0
    %789 = vmatpush1.xpose.msra.mxu0 0.0
    %790 = vmatprep.subr.mxu0 0.0
    %791 = vmatpush1.xpose.msra.mxu0 0.0
    %792 = vmatprep.subr.mxu0 0.0
    %793 = vmatpush1.xpose.msra.mxu0 0.0
    %794 = vmatprep.mubr.f32.mxu0 0.0
    %795 = vmatmul.mubr.f32.gmra.mrb[0].mxu0 %v726
    %v796 = vpop.f32.mrb[0].mxu0
    %v797 = vadd.f32 0.0, %v796
    %v798 = vpop.f32.mrb[0].mxu0
    %799 = vdwg.mxu0
    %v800 = vsel %vm322, %v719, -inf
    %801 = vmax.xlane.f32.xlu0 %v800
    %v802 = vpop.xlane.xlu0 %801
    %v803 = vsel %vm322, %v797, -inf
    %804 = vmax.xlane.f32.xlu0 %v803
    %v805 = vpop.xlane.xlu0 %804
    %v806 = vsub.f32 %v719, %v802
    %v807 = vsub.f32 %v797, %v805
    %v808 = vmul.f32 %v806, 1.442695
    %v809 = vpow.pop %v808
    %v810 = vmul.f32 %v807, 1.442695
    %v811 = vpow.pop %v810
    %v812 = vsel %vm322, %v809, 0.0
    %813 = vadd.xlane.f32.xlu0 %v812
    %v814 = vpop.xlane.xlu0 %813
    %v815 = vsel %vm322, %v811, 0.0
    %816 = vadd.xlane.f32.xlu0 %v815
    %v817 = vpop.xlane.xlu0 %816
    %v818 = vrcp.pop %v814
    %v819 = vrcp.pop %v817
    %v820 = vmul.f32 %v809, %v818
    %v821 = vmul.f32 %v811, %v819
    %v824 = vsel %vm322, %v820, 0
    %826 = vmatprep.subr.mxu0 0.0
    %827 = vmatpush1.msra.mxu0 %v647
    %828 = vmatprep.subr.mxu0 0.0
    %829 = vmatpush1.msra.mxu0 0.0
    %830 = vmatprep.subr.mxu0 0.0
    %831 = vmatpush1.msra.mxu0 0.0
    %832 = vmatprep.subr.mxu0 0.0
    %833 = vmatpush1.msra.mxu0 0.0
    %834 = vmatprep.subr.mxu0 0.0
    %835 = vmatpush1.msra.mxu0 0.0
    %836 = vmatprep.subr.mxu0 0.0
    %837 = vmatpush1.msra.mxu0 0.0
    %838 = vmatprep.subr.mxu0 0.0
    %839 = vmatpush1.msra.mxu0 0.0
    %840 = vmatprep.subr.mxu0 0.0
    %841 = vmatpush1.msra.mxu0 0.0
    %842 = vmatprep.subr.mxu0 0.0
    %843 = vmatpush1.msra.mxu0 0.0
    %844 = vmatprep.subr.mxu0 0.0
    %845 = vmatpush1.msra.mxu0 0.0
    %846 = vmatprep.subr.mxu0 0.0
    %847 = vmatpush1.msra.mxu0 0.0
    %848 = vmatprep.subr.mxu0 0.0
    %849 = vmatpush1.msra.mxu0 0.0
    %850 = vmatprep.subr.mxu0 0.0
    %851 = vmatpush1.msra.mxu0 0.0
    %852 = vmatprep.subr.mxu0 0.0
    %853 = vmatpush1.msra.mxu0 0.0
    %854 = vmatprep.subr.mxu0 0.0
    %855 = vmatpush1.msra.mxu0 0.0
    %856 = vmatprep.subr.mxu0 0.0
    %857 = vmatpush1.msra.mxu0 0.0
    %858 = vmatprep.subr.mxu0 0.0
    %859 = vmatpush1.msra.mxu0 0.0
    %860 = vmatprep.subr.mxu0 0.0
    %861 = vmatpush1.msra.mxu0 0.0
    %862 = vmatprep.subr.mxu0 0.0
    %863 = vmatpush1.msra.mxu0 0.0
    %864 = vmatprep.subr.mxu0 0.0
    %865 = vmatpush1.msra.mxu0 0.0
    %866 = vmatprep.subr.mxu0 0.0
    %867 = vmatpush1.msra.mxu0 0.0
    %868 = vmatprep.subr.mxu0 0.0
    %869 = vmatpush1.msra.mxu0 0.0
    %870 = vmatprep.subr.mxu0 0.0
    %871 = vmatpush1.msra.mxu0 0.0
    %872 = vmatprep.subr.mxu0 0.0
    %873 = vmatpush1.msra.mxu0 0.0
    %874 = vmatprep.subr.mxu0 0.0
    %875 = vmatpush1.msra.mxu0 0.0
    %876 = vmatprep.subr.mxu0 0.0
    %877 = vmatpush1.msra.mxu0 0.0
    %878 = vmatprep.subr.mxu0 0.0
    %879 = vmatpush1.msra.mxu0 0.0
    %880 = vmatprep.subr.mxu0 0.0
    %881 = vmatpush1.msra.mxu0 0.0
    %882 = vmatprep.subr.mxu0 0.0
    %883 = vmatpush1.msra.mxu0 0.0
    %884 = vmatprep.subr.mxu0 0.0
    %885 = vmatpush1.msra.mxu0 0.0
    %886 = vmatprep.subr.mxu0 0.0
    %887 = vmatpush1.msra.mxu0 0.0
    %888 = vmatprep.subr.mxu0 0.0
    %889 = vmatpush1.msra.mxu0 0.0
    %890 = vmatprep.mubr.f32.mxu0 0.0
    %891 = vmatmul.mubr.f32.gmra.mrb[0].mxu0 %v824
    %v892 = vpop.f32.mrb[0].mxu0
    %v893 = vadd.f32 0.0, %v892
    %v894 = vpop.f32.mrb[0].mxu0
    %895 = vdwg.mxu0
    %v898 = vsel %vm322, %v821, 0
    %900 = vmatprep.subr.mxu0 0.0
    %901 = vmatpush1.msra.mxu0 %v725
    %902 = vmatprep.subr.mxu0 0.0
    %903 = vmatpush1.msra.mxu0 0.0
    %904 = vmatprep.subr.mxu0 0.0
    %905 = vmatpush1.msra.mxu0 0.0
    %906 = vmatprep.subr.mxu0 0.0
    %907 = vmatpush1.msra.mxu0 0.0
    %908 = vmatprep.subr.mxu0 0.0
    %909 = vmatpush1.msra.mxu0 0.0
    %910 = vmatprep.subr.mxu0 0.0
    %911 = vmatpush1.msra.mxu0 0.0
    %912 = vmatprep.subr.mxu0 0.0
    %913 = vmatpush1.msra.mxu0 0.0
    %914 = vmatprep.subr.mxu0 0.0
    %915 = vmatpush1.msra.mxu0 0.0
    %916 = vmatprep.subr.mxu0 0.0
    %917 = vmatpush1.msra.mxu0 0.0
    %918 = vmatprep.subr.mxu0 0.0
    %919 = vmatpush1.msra.mxu0 0.0
    %920 = vmatprep.subr.mxu0 0.0
    %921 = vmatpush1.msra.mxu0 0.0
    %922 = vmatprep.subr.mxu0 0.0
    %923 = vmatpush1.msra.mxu0 0.0
    %924 = vmatprep.subr.mxu0 0.0
    %925 = vmatpush1.msra.mxu0 0.0
    %926 = vmatprep.subr.mxu0 0.0
    %927 = vmatpush1.msra.mxu0 0.0
    %928 = vmatprep.subr.mxu0 0.0
    %929 = vmatpush1.msra.mxu0 0.0
    %930 = vmatprep.subr.mxu0 0.0
    %931 = vmatpush1.msra.mxu0 0.0
    %932 = vmatprep.subr.mxu0 0.0
    %933 = vmatpush1.msra.mxu0 0.0
    %934 = vmatprep.subr.mxu0 0.0
    %935 = vmatpush1.msra.mxu0 0.0
    %936 = vmatprep.subr.mxu0 0.0
    %937 = vmatpush1.msra.mxu0 0.0
    %938 = vmatprep.subr.mxu0 0.0
    %939 = vmatpush1.msra.mxu0 0.0
    %940 = vmatprep.subr.mxu0 0.0
    %941 = vmatpush1.msra.mxu0 0.0
    %942 = vmatprep.subr.mxu0 0.0
    %943 = vmatpush1.msra.mxu0 0.0
    %944 = vmatprep.subr.mxu0 0.0
    %945 = vmatpush1.msra.mxu0 0.0
    %946 = vmatprep.subr.mxu0 0.0
    %947 = vmatpush1.msra.mxu0 0.0
    %948 = vmatprep.subr.mxu0 0.0
    %949 = vmatpush1.msra.mxu0 0.0
    %950 = vmatprep.subr.mxu0 0.0
    %951 = vmatpush1.msra.mxu0 0.0
    %952 = vmatprep.subr.mxu0 0.0
    %953 = vmatpush1.msra.mxu0 0.0
    %954 = vmatprep.subr.mxu0 0.0
    %955 = vmatpush1.msra.mxu0 0.0
    %956 = vmatprep.subr.mxu0 0.0
    %957 = vmatpush1.msra.mxu0 0.0
    %958 = vmatprep.subr.mxu0 0.0
    %959 = vmatpush1.msra.mxu0 0.0
    %960 = vmatprep.subr.mxu0 0.0
    %961 = vmatpush1.msra.mxu0 0.0
    %962 = vmatprep.subr.mxu0 0.0
    %963 = vmatpush1.msra.mxu0 0.0
    %964 = vmatprep.mubr.f32.mxu0 0.0
    %965 = vmatmul.mubr.f32.gmra.mrb[0].mxu0 %v898
    %v966 = vpop.f32.mrb[0].mxu0
    %v967 = vadd.f32 0.0, %v966
    %v968 = vpop.f32.mrb[0].mxu0
    %969 = vdwg.mxu0
    %v970 = vld [vmem:[#allocation13 + $0x8] sm:$0xff]
    %v972 = vsel %vm322, %v893, 0
    %v975 = vsel %vm322, %v967, 0
    %977 = vmatprep.subr.mxu0 0.0
    %978 = vmatpush1.msra.mxu0 %v970
    %979 = vmatprep.subr.mxu0 0.0
    %980 = vmatpush1.msra.mxu0 0.0
    %981 = vmatprep.subr.mxu0 0.0
    %982 = vmatpush1.msra.mxu0 0.0
    %983 = vmatprep.subr.mxu0 0.0
    %984 = vmatpush1.msra.mxu0 0.0
    %985 = vmatprep.subr.mxu0 0.0
    %986 = vmatpush1.msra.mxu0 0.0
    %987 = vmatprep.subr.mxu0 0.0
    %988 = vmatpush1.msra.mxu0 0.0
    %989 = vmatprep.subr.mxu0 0.0
    %990 = vmatpush1.msra.mxu0 0.0
    %991 = vmatprep.subr.mxu0 0.0
    %992 = vmatpush1.msra.mxu0 0.0
    %993 = vmatprep.subr.mxu0 0.0
    %994 = vmatpush1.msra.mxu0 0.0
    %995 = vmatprep.subr.mxu0 0.0
    %996 = vmatpush1.msra.mxu0 0.0
    %997 = vmatprep.subr.mxu0 0.0
    %998 = vmatpush1.msra.mxu0 0.0
    %999 = vmatprep.subr.mxu0 0.0
    %1000 = vmatpush1.msra.mxu0 0.0
    %1001 = vmatprep.subr.mxu0 0.0
    %1002 = vmatpush1.msra.mxu0 0.0
    %1003 = vmatprep.subr.mxu0 0.0
    %1004 = vmatpush1.msra.mxu0 0.0
    %1005 = vmatprep.subr.mxu0 0.0
    %1006 = vmatpush1.msra.mxu0 0.0
    %1007 = vmatprep.subr.mxu0 0.0
    %1008 = vmatpush1.msra.mxu0 0.0
    %1009 = vmatprep.subr.mxu0 0.0
    %1010 = vmatpush1.msra.mxu0 0.0
    %1011 = vmatprep.subr.mxu0 0.0
    %1012 = vmatpush1.msra.mxu0 0.0
    %1013 = vmatprep.subr.mxu0 0.0
    %1014 = vmatpush1.msra.mxu0 0.0
    %1015 = vmatprep.subr.mxu0 0.0
    %1016 = vmatpush1.msra.mxu0 0.0
    %1017 = vmatprep.subr.mxu0 0.0
    %1018 = vmatpush1.msra.mxu0 0.0
    %1019 = vmatprep.subr.mxu0 0.0
    %1020 = vmatpush1.msra.mxu0 0.0
    %1021 = vmatprep.subr.mxu0 0.0
    %1022 = vmatpush1.msra.mxu0 0.0
    %1023 = vmatprep.subr.mxu0 0.0
    %1024 = vmatpush1.msra.mxu0 0.0
    %1025 = vmatprep.subr.mxu0 0.0
    %1026 = vmatpush1.msra.mxu0 0.0
    %1027 = vmatprep.subr.mxu0 0.0
    %1028 = vmatpush1.msra.mxu0 0.0
    %1029 = vmatprep.subr.mxu0 0.0
    %1030 = vmatpush1.msra.mxu0 0.0
    %1031 = vmatprep.subr.mxu0 0.0
    %1032 = vmatpush1.msra.mxu0 0.0
    %1033 = vmatprep.subr.mxu0 0.0
    %1034 = vmatpush1.msra.mxu0 0.0
    %1035 = vmatprep.subr.mxu0 0.0
    %1036 = vmatpush1.msra.mxu0 0.0
    %1037 = vmatprep.subr.mxu0 0.0
    %1038 = vmatpush1.msra.mxu0 0.0
    %1039 = vmatprep.subr.mxu0 0.0
    %1040 = vmatpush1.msra.mxu0 0.0
    %1041 = vmatprep.mubr.f32.mxu0 0.0
    %1042 = vmatmul.mubr.f32.gmra.mrb[0].mxu0 %v972
    %v1043 = vpop.f32.mrb[0].mxu0
    %v1044 = vadd.f32 0.0, %v1043
    %v1045 = vpop.f32.mrb[0].mxu0
    %1046 = vmatprep.mubr.f32.mxu0 0.0
    %1047 = vmatmul.mubr.f32.gmra.mrb[0].mxu0 %v975
    %v1048 = vpop.f32.mrb[0].mxu0
    %v1049 = vadd.f32 0.0, %v1048
    %v1050 = vpop.f32.mrb[0].mxu0
    %1051 = vdwg.mxu0
    %v1053 = vsel %vm322, %v567, 0
    %v1056 = vsel %vm322, %v640, 0
    %1058 = vmatprep.subr.mxu0 0.0
    %1059 = vmatpush1.msra.mxu0 %v643
    %1060 = vmatprep.subr.mxu0 0.0
    %1061 = vmatpush1.msra.mxu0 0.0
    %1062 = vmatprep.subr.mxu0 0.0
    %1063 = vmatpush1.msra.mxu0 0.0
    %1064 = vmatprep.subr.mxu0 0.0
    %1065 = vmatpush1.msra.mxu0 0.0
    %1066 = vmatprep.subr.mxu0 0.0
    %1067 = vmatpush1.msra.mxu0 0.0
    %1068 = vmatprep.subr.mxu0 0.0
    %1069 = vmatpush1.msra.mxu0 0.0
    %1070 = vmatprep.subr.mxu0 0.0
    %1071 = vmatpush1.msra.mxu0 0.0
    %1072 = vmatprep.subr.mxu0 0.0
    %1073 = vmatpush1.msra.mxu0 0.0
    %1074 = vmatprep.subr.mxu0 0.0
    %1075 = vmatpush1.msra.mxu0 0.0
    %1076 = vmatprep.subr.mxu0 0.0
    %1077 = vmatpush1.msra.mxu0 0.0
    %1078 = vmatprep.subr.mxu0 0.0
    %1079 = vmatpush1.msra.mxu0 0.0
    %1080 = vmatprep.subr.mxu0 0.0
    %1081 = vmatpush1.msra.mxu0 0.0
    %1082 = vmatprep.subr.mxu0 0.0
    %1083 = vmatpush1.msra.mxu0 0.0
    %1084 = vmatprep.subr.mxu0 0.0
    %1085 = vmatpush1.msra.mxu0 0.0
    %1086 = vmatprep.subr.mxu0 0.0
    %1087 = vmatpush1.msra.mxu0 0.0
    %1088 = vmatprep.subr.mxu0 0.0
    %1089 = vmatpush1.msra.mxu0 0.0
    %1090 = vmatprep.subr.mxu0 0.0
    %1091 = vmatpush1.msra.mxu0 0.0
    %1092 = vmatprep.subr.mxu0 0.0
    %1093 = vmatpush1.msra.mxu0 0.0
    %1094 = vmatprep.subr.mxu0 0.0
    %1095 = vmatpush1.msra.mxu0 0.0
    %1096 = vmatprep.subr.mxu0 0.0
    %1097 = vmatpush1.msra.mxu0 0.0
    %1098 = vmatprep.subr.mxu0 0.0
    %1099 = vmatpush1.msra.mxu0 0.0
    %1100 = vmatprep.subr.mxu0 0.0
    %1101 = vmatpush1.msra.mxu0 0.0
    %1102 = vmatprep.subr.mxu0 0.0
    %1103 = vmatpush1.msra.mxu0 0.0
    %1104 = vmatprep.subr.mxu0 0.0
    %1105 = vmatpush1.msra.mxu0 0.0
    %1106 = vmatprep.subr.mxu0 0.0
    %1107 = vmatpush1.msra.mxu0 0.0
    %1108 = vmatprep.subr.mxu0 0.0
    %1109 = vmatpush1.msra.mxu0 0.0
    %1110 = vmatprep.subr.mxu0 0.0
    %1111 = vmatpush1.msra.mxu0 0.0
    %1112 = vmatprep.subr.mxu0 0.0
    %1113 = vmatpush1.msra.mxu0 0.0
    %1114 = vmatprep.subr.mxu0 0.0
    %1115 = vmatpush1.msra.mxu0 0.0
    %1116 = vmatprep.subr.mxu0 0.0
    %1117 = vmatpush1.msra.mxu0 0.0
    %1118 = vmatprep.subr.mxu0 0.0
    %1119 = vmatpush1.msra.mxu0 0.0
    %1120 = vmatprep.subr.mxu0 0.0
    %1121 = vmatpush1.msra.mxu0 0.0
    %1122 = vmatprep.mubr.f32.mxu0 0.0
    %1123 = vmatmul.mubr.f32.gmra.mrb[0].mxu0 %v1053
    %v1124 = vpop.f32.mrb[0].mxu0
    %v1125 = vadd.f32 %v1044, %v1124
    %v1126 = vpop.f32.mrb[0].mxu0
    %1127 = vmatprep.mubr.f32.mxu0 0.0
    %1128 = vmatmul.mubr.f32.gmra.mrb[0].mxu0 %v1056
    %v1129 = vpop.f32.mrb[0].mxu0
    %v1130 = vadd.f32 %v1049, %v1129
    %v1131 = vpop.f32.mrb[0].mxu0
    %1132 = vdwg.mxu0
    %1133 = vrot.lane.b32.xlu0 %v314, 112
    %v1134 = vpop.permute.xlu0 %1133
    %1135 = vrot.lane.b32.xlu0 %v222, 112
    %v1136 = vpop.permute.xlu0 %1135
    %v1137 = vsel %vm322, %v1134, 0
    %v1139 = vsel %vm322, %v1136, 0
    %1141 = vmatprep.subr.mxu0 0.0
    %1142 = vmatpush1.xpose.msra.mxu0 %v1139
    %1143 = vmatprep.subr.mxu0 0.0
    %1144 = vmatpush1.xpose.msra.mxu0 0.0
    %1145 = vmatprep.subr.mxu0 0.0
    %1146 = vmatpush1.xpose.msra.mxu0 0.0
    %1147 = vmatprep.subr.mxu0 0.0
    %1148 = vmatpush1.xpose.msra.mxu0 0.0
    %1149 = vmatprep.subr.mxu0 0.0
    %1150 = vmatpush1.xpose.msra.mxu0 0.0
    %1151 = vmatprep.subr.mxu0 0.0
    %1152 = vmatpush1.xpose.msra.mxu0 0.0
    %1153 = vmatprep.subr.mxu0 0.0
    %1154 = vmatpush1.xpose.msra.mxu0 0.0
    %1155 = vmatprep.subr.mxu0 0.0
    %1156 = vmatpush1.xpose.msra.mxu0 0.0
    %1157 = vmatprep.subr.mxu0 0.0
    %1158 = vmatpush1.xpose.msra.mxu0 0.0
    %1159 = vmatprep.subr.mxu0 0.0
    %1160 = vmatpush1.xpose.msra.mxu0 0.0
    %1161 = vmatprep.subr.mxu0 0.0
    %1162 = vmatpush1.xpose.msra.mxu0 0.0
    %1163 = vmatprep.subr.mxu0 0.0
    %1164 = vmatpush1.xpose.msra.mxu0 0.0
    %1165 = vmatprep.subr.mxu0 0.0
    %1166 = vmatpush1.xpose.msra.mxu0 0.0
    %1167 = vmatprep.subr.mxu0 0.0
    %1168 = vmatpush1.xpose.msra.mxu0 0.0
    %1169 = vmatprep.subr.mxu0 0.0
    %1170 = vmatpush1.xpose.msra.mxu0 0.0
    %1171 = vmatprep.subr.mxu0 0.0
    %1172 = vmatpush1.xpose.msra.mxu0 0.0
    %1173 = vmatprep.subr.mxu0 0.0
    %1174 = vmatpush1.xpose.msra.mxu0 0.0
    %1175 = vmatprep.subr.mxu0 0.0
    %1176 = vmatpush1.xpose.msra.mxu0 0.0
    %1177 = vmatprep.subr.mxu0 0.0
    %1178 = vmatpush1.xpose.msra.mxu0 0.0
    %1179 = vmatprep.subr.mxu0 0.0
    %1180 = vmatpush1.xpose.msra.mxu0 0.0
    %1181 = vmatprep.subr.mxu0 0.0
    %1182 = vmatpush1.xpose.msra.mxu0 0.0
    %1183 = vmatprep.subr.mxu0 0.0
    %1184 = vmatpush1.xpose.msra.mxu0 0.0
    %1185 = vmatprep.subr.mxu0 0.0
    %1186 = vmatpush1.xpose.msra.mxu0 0.0
    %1187 = vmatprep.subr.mxu0 0.0
    %1188 = vmatpush1.xpose.msra.mxu0 0.0
    %1189 = vmatprep.subr.mxu0 0.0
    %1190 = vmatpush1.xpose.msra.mxu0 0.0
    %1191 = vmatprep.subr.mxu0 0.0
    %1192 = vmatpush1.xpose.msra.mxu0 0.0
    %1193 = vmatprep.subr.mxu0 0.0
    %1194 = vmatpush1.xpose.msra.mxu0 0.0
    %1195 = vmatprep.subr.mxu0 0.0
    %1196 = vmatpush1.xpose.msra.mxu0 0.0
    %1197 = vmatprep.subr.mxu0 0.0
    %1198 = vmatpush1.xpose.msra.mxu0 0.0
    %1199 = vmatprep.subr.mxu0 0.0
    %1200 = vmatpush1.xpose.msra.mxu0 0.0
    %1201 = vmatprep.subr.mxu0 0.0
    %1202 = vmatpush1.xpose.msra.mxu0 0.0
    %1203 = vmatprep.subr.mxu0 0.0
    %1204 = vmatpush1.xpose.msra.mxu0 0.0
    %1205 = vmatprep.mubr.f32.mxu0 0.0
    %1206 = vmatmul.mubr.f32.gmra.mrb[0].mxu0 %v1137
    %v1207 = vpop.f32.mrb[0].mxu0
    %v1208 = vadd.f32 0.0, %v1207
    %v1209 = vpop.f32.mrb[0].mxu0
    %1210 = vdwg.mxu0
    %1211 = vrot.lane.b32.xlu0 %v319, 112
    %v1212 = vpop.permute.xlu0 %1211
    %1213 = vrot.lane.b32.xlu0 %v227, 112
    %v1214 = vpop.permute.xlu0 %1213
    %v1215 = vsel %vm322, %v1212, 0
    %v1217 = vsel %vm322, %v1214, 0
    %1219 = vmatprep.subr.mxu0 0.0
    %1220 = vmatpush1.xpose.msra.mxu0 %v1217
    %1221 = vmatprep.subr.mxu0 0.0
    %1222 = vmatpush1.xpose.msra.mxu0 0.0
    %1223 = vmatprep.subr.mxu0 0.0
    %1224 = vmatpush1.xpose.msra.mxu0 0.0
    %1225 = vmatprep.subr.mxu0 0.0
    %1226 = vmatpush1.xpose.msra.mxu0 0.0
    %1227 = vmatprep.subr.mxu0 0.0
    %1228 = vmatpush1.xpose.msra.mxu0 0.0
    %1229 = vmatprep.subr.mxu0 0.0
    %1230 = vmatpush1.xpose.msra.mxu0 0.0
    %1231 = vmatprep.subr.mxu0 0.0
    %1232 = vmatpush1.xpose.msra.mxu0 0.0
    %1233 = vmatprep.subr.mxu0 0.0
    %1234 = vmatpush1.xpose.msra.mxu0 0.0
    %1235 = vmatprep.subr.mxu0 0.0
    %1236 = vmatpush1.xpose.msra.mxu0 0.0
    %1237 = vmatprep.subr.mxu0 0.0
    %1238 = vmatpush1.xpose.msra.mxu0 0.0
    %1239 = vmatprep.subr.mxu0 0.0
    %1240 = vmatpush1.xpose.msra.mxu0 0.0
    %1241 = vmatprep.subr.mxu0 0.0
    %1242 = vmatpush1.xpose.msra.mxu0 0.0
    %1243 = vmatprep.subr.mxu0 0.0
    %1244 = vmatpush1.xpose.msra.mxu0 0.0
    %1245 = vmatprep.subr.mxu0 0.0
    %1246 = vmatpush1.xpose.msra.mxu0 0.0
    %1247 = vmatprep.subr.mxu0 0.0
    %1248 = vmatpush1.xpose.msra.mxu0 0.0
    %1249 = vmatprep.subr.mxu0 0.0
    %1250 = vmatpush1.xpose.msra.mxu0 0.0
    %1251 = vmatprep.subr.mxu0 0.0
    %1252 = vmatpush1.xpose.msra.mxu0 0.0
    %1253 = vmatprep.subr.mxu0 0.0
    %1254 = vmatpush1.xpose.msra.mxu0 0.0
    %1255 = vmatprep.subr.mxu0 0.0
    %1256 = vmatpush1.xpose.msra.mxu0 0.0
    %1257 = vmatprep.subr.mxu0 0.0
    %1258 = vmatpush1.xpose.msra.mxu0 0.0
    %1259 = vmatprep.subr.mxu0 0.0
    %1260 = vmatpush1.xpose.msra.mxu0 0.0
    %1261 = vmatprep.subr.mxu0 0.0
    %1262 = vmatpush1.xpose.msra.mxu0 0.0
    %1263 = vmatprep.subr.mxu0 0.0
    %1264 = vmatpush1.xpose.msra.mxu0 0.0
    %1265 = vmatprep.subr.mxu0 0.0
    %1266 = vmatpush1.xpose.msra.mxu0 0.0
    %1267 = vmatprep.subr.mxu0 0.0
    %1268 = vmatpush1.xpose.msra.mxu0 0.0
    %1269 = vmatprep.subr.mxu0 0.0
    %1270 = vmatpush1.xpose.msra.mxu0 0.0
    %1271 = vmatprep.subr.mxu0 0.0
    %1272 = vmatpush1.xpose.msra.mxu0 0.0
    %1273 = vmatprep.subr.mxu0 0.0
    %1274 = vmatpush1.xpose.msra.mxu0 0.0
    %1275 = vmatprep.subr.mxu0 0.0
    %1276 = vmatpush1.xpose.msra.mxu0 0.0
    %1277 = vmatprep.subr.mxu0 0.0
    %1278 = vmatpush1.xpose.msra.mxu0 0.0
    %1279 = vmatprep.subr.mxu0 0.0
    %1280 = vmatpush1.xpose.msra.mxu0 0.0
    %1281 = vmatprep.subr.mxu0 0.0
    %1282 = vmatpush1.xpose.msra.mxu0 0.0
    %1283 = vmatprep.mubr.f32.mxu0 0.0
    %1284 = vmatmul.mubr.f32.gmra.mrb[0].mxu0 %v1215
    %v1285 = vpop.f32.mrb[0].mxu0
    %v1286 = vadd.f32 0.0, %v1285
    %v1287 = vpop.f32.mrb[0].mxu0
    %1288 = vdwg.mxu0
    %v1289 = vsel %vm322, %v1208, -inf
    %1290 = vmax.xlane.f32.xlu0 %v1289
    %v1291 = vpop.xlane.xlu0 %1290
    %v1292 = vsel %vm322, %v1286, -inf
    %1293 = vmax.xlane.f32.xlu0 %v1292
    %v1294 = vpop.xlane.xlu0 %1293
    %v1295 = vsub.f32 %v1208, %v1291
    %v1296 = vsub.f32 %v1286, %v1294
    %v1297 = vmul.f32 %v1295, 1.442695
    %v1298 = vpow.pop %v1297
    %v1299 = vmul.f32 %v1296, 1.442695
    %v1300 = vpow.pop %v1299
    %v1301 = vsel %vm322, %v1298, 0.0
    %1302 = vadd.xlane.f32.xlu0 %v1301
    %v1303 = vpop.xlane.xlu0 %1302
    %v1304 = vsel %vm322, %v1300, 0.0
    %1305 = vadd.xlane.f32.xlu0 %v1304
    %v1306 = vpop.xlane.xlu0 %1305
    %v1307 = vrcp.pop %v1303
    %v1308 = vrcp.pop %v1306
    %v1309 = vmul.f32 %v1298, %v1307
    %v1310 = vmul.f32 %v1300, %v1308
    %v1313 = vsel %vm322, %v1309, 0
    %1315 = vmatprep.subr.mxu0 0.0
    %1316 = vmatpush1.msra.mxu0 %v1136
    %1317 = vmatprep.subr.mxu0 0.0
    %1318 = vmatpush1.msra.mxu0 0.0
    %1319 = vmatprep.subr.mxu0 0.0
    %1320 = vmatpush1.msra.mxu0 0.0
    %1321 = vmatprep.subr.mxu0 0.0
    %1322 = vmatpush1.msra.mxu0 0.0
    %1323 = vmatprep.subr.mxu0 0.0
    %1324 = vmatpush1.msra.mxu0 0.0
    %1325 = vmatprep.subr.mxu0 0.0
    %1326 = vmatpush1.msra.mxu0 0.0
    %1327 = vmatprep.subr.mxu0 0.0
    %1328 = vmatpush1.msra.mxu0 0.0
    %1329 = vmatprep.subr.mxu0 0.0
    %1330 = vmatpush1.msra.mxu0 0.0
    %1331 = vmatprep.subr.mxu0 0.0
    %1332 = vmatpush1.msra.mxu0 0.0
    %1333 = vmatprep.subr.mxu0 0.0
    %1334 = vmatpush1.msra.mxu0 0.0
    %1335 = vmatprep.subr.mxu0 0.0
    %1336 = vmatpush1.msra.mxu0 0.0
    %1337 = vmatprep.subr.mxu0 0.0
    %1338 = vmatpush1.msra.mxu0 0.0
    %1339 = vmatprep.subr.mxu0 0.0
    %1340 = vmatpush1.msra.mxu0 0.0
    %1341 = vmatprep.subr.mxu0 0.0
    %1342 = vmatpush1.msra.mxu0 0.0
    %1343 = vmatprep.subr.mxu0 0.0
    %1344 = vmatpush1.msra.mxu0 0.0
    %1345 = vmatprep.subr.mxu0 0.0
    %1346 = vmatpush1.msra.mxu0 0.0
    %1347 = vmatprep.subr.mxu0 0.0
    %1348 = vmatpush1.msra.mxu0 0.0
    %1349 = vmatprep.subr.mxu0 0.0
    %1350 = vmatpush1.msra.mxu0 0.0
    %1351 = vmatprep.subr.mxu0 0.0
    %1352 = vmatpush1.msra.mxu0 0.0
    %1353 = vmatprep.subr.mxu0 0.0
    %1354 = vmatpush1.msra.mxu0 0.0
    %1355 = vmatprep.subr.mxu0 0.0
    %1356 = vmatpush1.msra.mxu0 0.0
    %1357 = vmatprep.subr.mxu0 0.0
    %1358 = vmatpush1.msra.mxu0 0.0
    %1359 = vmatprep.subr.mxu0 0.0
    %1360 = vmatpush1.msra.mxu0 0.0
    %1361 = vmatprep.subr.mxu0 0.0
    %1362 = vmatpush1.msra.mxu0 0.0
    %1363 = vmatprep.subr.mxu0 0.0
    %1364 = vmatpush1.msra.mxu0 0.0
    %1365 = vmatprep.subr.mxu0 0.0
    %1366 = vmatpush1.msra.mxu0 0.0
    %1367 = vmatprep.subr.mxu0 0.0
    %1368 = vmatpush1.msra.mxu0 0.0
    %1369 = vmatprep.subr.mxu0 0.0
    %1370 = vmatpush1.msra.mxu0 0.0
    %1371 = vmatprep.subr.mxu0 0.0
    %1372 = vmatpush1.msra.mxu0 0.0
    %1373 = vmatprep.subr.mxu0 0.0
    %1374 = vmatpush1.msra.mxu0 0.0
    %1375 = vmatprep.subr.mxu0 0.0
    %1376 = vmatpush1.msra.mxu0 0.0
    %1377 = vmatprep.subr.mxu0 0.0
    %1378 = vmatpush1.msra.mxu0 0.0
    %1379 = vmatprep.mubr.f32.mxu0 0.0
    %1380 = vmatmul.mubr.f32.gmra.mrb[0].mxu0 %v1313
    %v1381 = vpop.f32.mrb[0].mxu0
    %v1382 = vadd.f32 0.0, %v1381
    %v1383 = vpop.f32.mrb[0].mxu0
    %1384 = vdwg.mxu0
    %v1387 = vsel %vm322, %v1310, 0
    %1389 = vmatprep.subr.mxu0 0.0
    %1390 = vmatpush1.msra.mxu0 %v1214
    %1391 = vmatprep.subr.mxu0 0.0
    %1392 = vmatpush1.msra.mxu0 0.0
    %1393 = vmatprep.subr.mxu0 0.0
    %1394 = vmatpush1.msra.mxu0 0.0
    %1395 = vmatprep.subr.mxu0 0.0
    %1396 = vmatpush1.msra.mxu0 0.0
    %1397 = vmatprep.subr.mxu0 0.0
    %1398 = vmatpush1.msra.mxu0 0.0
    %1399 = vmatprep.subr.mxu0 0.0
    %1400 = vmatpush1.msra.mxu0 0.0
    %1401 = vmatprep.subr.mxu0 0.0
    %1402 = vmatpush1.msra.mxu0 0.0
    %1403 = vmatprep.subr.mxu0 0.0
    %1404 = vmatpush1.msra.mxu0 0.0
    %1405 = vmatprep.subr.mxu0 0.0
    %1406 = vmatpush1.msra.mxu0 0.0
    %1407 = vmatprep.subr.mxu0 0.0
    %1408 = vmatpush1.msra.mxu0 0.0
    %1409 = vmatprep.subr.mxu0 0.0
    %1410 = vmatpush1.msra.mxu0 0.0
    %1411 = vmatprep.subr.mxu0 0.0
    %1412 = vmatpush1.msra.mxu0 0.0
    %1413 = vmatprep.subr.mxu0 0.0
    %1414 = vmatpush1.msra.mxu0 0.0
    %1415 = vmatprep.subr.mxu0 0.0
    %1416 = vmatpush1.msra.mxu0 0.0
    %1417 = vmatprep.subr.mxu0 0.0
    %1418 = vmatpush1.msra.mxu0 0.0
    %1419 = vmatprep.subr.mxu0 0.0
    %1420 = vmatpush1.msra.mxu0 0.0
    %1421 = vmatprep.subr.mxu0 0.0
    %1422 = vmatpush1.msra.mxu0 0.0
    %1423 = vmatprep.subr.mxu0 0.0
    %1424 = vmatpush1.msra.mxu0 0.0
    %1425 = vmatprep.subr.mxu0 0.0
    %1426 = vmatpush1.msra.mxu0 0.0
    %1427 = vmatprep.subr.mxu0 0.0
    %1428 = vmatpush1.msra.mxu0 0.0
    %1429 = vmatprep.subr.mxu0 0.0
    %1430 = vmatpush1.msra.mxu0 0.0
    %1431 = vmatprep.subr.mxu0 0.0
    %1432 = vmatpush1.msra.mxu0 0.0
    %1433 = vmatprep.subr.mxu0 0.0
    %1434 = vmatpush1.msra.mxu0 0.0
    %1435 = vmatprep.subr.mxu0 0.0
    %1436 = vmatpush1.msra.mxu0 0.0
    %1437 = vmatprep.subr.mxu0 0.0
    %1438 = vmatpush1.msra.mxu0 0.0
    %1439 = vmatprep.subr.mxu0 0.0
    %1440 = vmatpush1.msra.mxu0 0.0
    %1441 = vmatprep.subr.mxu0 0.0
    %1442 = vmatpush1.msra.mxu0 0.0
    %1443 = vmatprep.subr.mxu0 0.0
    %1444 = vmatpush1.msra.mxu0 0.0
    %1445 = vmatprep.subr.mxu0 0.0
    %1446 = vmatpush1.msra.mxu0 0.0
    %1447 = vmatprep.subr.mxu0 0.0
    %1448 = vmatpush1.msra.mxu0 0.0
    %1449 = vmatprep.subr.mxu0 0.0
    %1450 = vmatpush1.msra.mxu0 0.0
    %1451 = vmatprep.subr.mxu0 0.0
    %1452 = vmatpush1.msra.mxu0 0.0
    %1453 = vmatprep.mubr.f32.mxu0 0.0
    %1454 = vmatmul.mubr.f32.gmra.mrb[0].mxu0 %v1387
    %v1455 = vpop.f32.mrb[0].mxu0
    %v1456 = vadd.f32 0.0, %v1455
    %v1457 = vpop.f32.mrb[0].mxu0
    %1458 = vdwg.mxu0
    %v1459 = vld [vmem:[#allocation13 + $0x10] sm:$0xff]
    %v1461 = vsel %vm322, %v1382, 0
    %v1464 = vsel %vm322, %v1456, 0
    %1466 = vmatprep.subr.mxu0 0.0
    %1467 = vmatpush1.msra.mxu0 %v1459
    %1468 = vmatprep.subr.mxu0 0.0
    %1469 = vmatpush1.msra.mxu0 0.0
    %1470 = vmatprep.subr.mxu0 0.0
    %1471 = vmatpush1.msra.mxu0 0.0
    %1472 = vmatprep.subr.mxu0 0.0
    %1473 = vmatpush1.msra.mxu0 0.0
    %1474 = vmatprep.subr.mxu0 0.0
    %1475 = vmatpush1.msra.mxu0 0.0
    %1476 = vmatprep.subr.mxu0 0.0
    %1477 = vmatpush1.msra.mxu0 0.0
    %1478 = vmatprep.subr.mxu0 0.0
    %1479 = vmatpush1.msra.mxu0 0.0
    %1480 = vmatprep.subr.mxu0 0.0
    %1481 = vmatpush1.msra.mxu0 0.0
    %1482 = vmatprep.subr.mxu0 0.0
    %1483 = vmatpush1.msra.mxu0 0.0
    %1484 = vmatprep.subr.mxu0 0.0
    %1485 = vmatpush1.msra.mxu0 0.0
    %1486 = vmatprep.subr.mxu0 0.0
    %1487 = vmatpush1.msra.mxu0 0.0
    %1488 = vmatprep.subr.mxu0 0.0
    %1489 = vmatpush1.msra.mxu0 0.0
    %1490 = vmatprep.subr.mxu0 0.0
    %1491 = vmatpush1.msra.mxu0 0.0
    %1492 = vmatprep.subr.mxu0 0.0
    %1493 = vmatpush1.msra.mxu0 0.0
    %1494 = vmatprep.subr.mxu0 0.0
    %1495 = vmatpush1.msra.mxu0 0.0
    %1496 = vmatprep.subr.mxu0 0.0
    %1497 = vmatpush1.msra.mxu0 0.0
    %1498 = vmatprep.subr.mxu0 0.0
    %1499 = vmatpush1.msra.mxu0 0.0
    %1500 = vmatprep.subr.mxu0 0.0
    %1501 = vmatpush1.msra.mxu0 0.0
    %1502 = vmatprep.subr.mxu0 0.0
    %1503 = vmatpush1.msra.mxu0 0.0
    %1504 = vmatprep.subr.mxu0 0.0
    %1505 = vmatpush1.msra.mxu0 0.0
    %1506 = vmatprep.subr.mxu0 0.0
    %1507 = vmatpush1.msra.mxu0 0.0
    %1508 = vmatprep.subr.mxu0 0.0
    %1509 = vmatpush1.msra.mxu0 0.0
    %1510 = vmatprep.subr.mxu0 0.0
    %1511 = vmatpush1.msra.mxu0 0.0
    %1512 = vmatprep.subr.mxu0 0.0
    %1513 = vmatpush1.msra.mxu0 0.0
    %1514 = vmatprep.subr.mxu0 0.0
    %1515 = vmatpush1.msra.mxu0 0.0
    %1516 = vmatprep.subr.mxu0 0.0
    %1517 = vmatpush1.msra.mxu0 0.0
    %1518 = vmatprep.subr.mxu0 0.0
    %1519 = vmatpush1.msra.mxu0 0.0
    %1520 = vmatprep.subr.mxu0 0.0
    %1521 = vmatpush1.msra.mxu0 0.0
    %1522 = vmatprep.subr.mxu0 0.0
    %1523 = vmatpush1.msra.mxu0 0.0
    %1524 = vmatprep.subr.mxu0 0.0
    %1525 = vmatpush1.msra.mxu0 0.0
    %1526 = vmatprep.subr.mxu0 0.0
    %1527 = vmatpush1.msra.mxu0 0.0
    %1528 = vmatprep.subr.mxu0 0.0
    %1529 = vmatpush1.msra.mxu0 0.0
    %1530 = vmatprep.mubr.f32.mxu0 0.0
    %1531 = vmatmul.mubr.f32.gmra.mrb[0].mxu0 %v1461
    %v1532 = vpop.f32.mrb[0].mxu0
    %v1533 = vadd.f32 0.0, %v1532
    %v1534 = vpop.f32.mrb[0].mxu0
    %1535 = vmatprep.mubr.f32.mxu0 0.0
    %1536 = vmatmul.mubr.f32.gmra.mrb[0].mxu0 %v1464
    %v1537 = vpop.f32.mrb[0].mxu0
    %v1538 = vadd.f32 0.0, %v1537
    %v1539 = vpop.f32.mrb[0].mxu0
    %1540 = vdwg.mxu0
    %v1541 = vadd.f32 %v1125, %v1533
    %v1542 = vadd.f32 %v1130, %v1538
    %1543 = vrot.lane.b32.xlu0 %v314, 104
    %v1544 = vpop.permute.xlu0 %1543
    %1545 = vrot.lane.b32.xlu0 %v222, 104
    %v1546 = vpop.permute.xlu0 %1545
    %v1547 = vsel %vm322, %v1544, 0
    %v1549 = vsel %vm322, %v1546, 0
    %1551 = vmatprep.subr.mxu0 0.0
    %1552 = vmatpush1.xpose.msra.mxu0 %v1549
    %1553 = vmatprep.subr.mxu0 0.0
    %1554 = vmatpush1.xpose.msra.mxu0 0.0
    %1555 = vmatprep.subr.mxu0 0.0
    %1556 = vmatpush1.xpose.msra.mxu0 0.0
    %1557 = vmatprep.subr.mxu0 0.0
    %1558 = vmatpush1.xpose.msra.mxu0 0.0
    %1559 = vmatprep.subr.mxu0 0.0
    %1560 = vmatpush1.xpose.msra.mxu0 0.0
    %1561 = vmatprep.subr.mxu0 0.0
    %1562 = vmatpush1.xpose.msra.mxu0 0.0
    %1563 = vmatprep.subr.mxu0 0.0
    %1564 = vmatpush1.xpose.msra.mxu0 0.0
    %1565 = vmatprep.subr.mxu0 0.0
    %1566 = vmatpush1.xpose.msra.mxu0 0.0
    %1567 = vmatprep.subr.mxu0 0.0
    %1568 = vmatpush1.xpose.msra.mxu0 0.0
    %1569 = vmatprep.subr.mxu0 0.0
    %1570 = vmatpush1.xpose.msra.mxu0 0.0
    %1571 = vmatprep.subr.mxu0 0.0
    %1572 = vmatpush1.xpose.msra.mxu0 0.0
    %1573 = vmatprep.subr.mxu0 0.0
    %1574 = vmatpush1.xpose.msra.mxu0 0.0
    %1575 = vmatprep.subr.mxu0 0.0
    %1576 = vmatpush1.xpose.msra.mxu0 0.0
    %1577 = vmatprep.subr.mxu0 0.0
    %1578 = vmatpush1.xpose.msra.mxu0 0.0
    %1579 = vmatprep.subr.mxu0 0.0
    %1580 = vmatpush1.xpose.msra.mxu0 0.0
    %1581 = vmatprep.subr.mxu0 0.0
    %1582 = vmatpush1.xpose.msra.mxu0 0.0
    %1583 = vmatprep.subr.mxu0 0.0
    %1584 = vmatpush1.xpose.msra.mxu0 0.0
    %1585 = vmatprep.subr.mxu0 0.0
    %1586 = vmatpush1.xpose.msra.mxu0 0.0
    %1587 = vmatprep.subr.mxu0 0.0
    %1588 = vmatpush1.xpose.msra.mxu0 0.0
    %1589 = vmatprep.subr.mxu0 0.0
    %1590 = vmatpush1.xpose.msra.mxu0 0.0
    %1591 = vmatprep.subr.mxu0 0.0
    %1592 = vmatpush1.xpose.msra.mxu0 0.0
    %1593 = vmatprep.subr.mxu0 0.0
    %1594 = vmatpush1.xpose.msra.mxu0 0.0
    %1595 = vmatprep.subr.mxu0 0.0
    %1596 = vmatpush1.xpose.msra.mxu0 0.0
    %1597 = vmatprep.subr.mxu0 0.0
    %1598 = vmatpush1.xpose.msra.mxu0 0.0
    %1599 = vmatprep.subr.mxu0 0.0
    %1600 = vmatpush1.xpose.msra.mxu0 0.0
    %1601 = vmatprep.subr.mxu0 0.0
    %1602 = vmatpush1.xpose.msra.mxu0 0.0
    %1603 = vmatprep.subr.mxu0 0.0
    %1604 = vmatpush1.xpose.msra.mxu0 0.0
    %1605 = vmatprep.subr.mxu0 0.0
    %1606 = vmatpush1.xpose.msra.mxu0 0.0
    %1607 = vmatprep.subr.mxu0 0.0
    %1608 = vmatpush1.xpose.msra.mxu0 0.0
    %1609 = vmatprep.subr.mxu0 0.0
    %1610 = vmatpush1.xpose.msra.mxu0 0.0
    %1611 = vmatprep.subr.mxu0 0.0
    %1612 = vmatpush1.xpose.msra.mxu0 0.0
    %1613 = vmatprep.subr.mxu0 0.0
    %1614 = vmatpush1.xpose.msra.mxu0 0.0
    %1615 = vmatprep.mubr.f32.mxu0 0.0
    %1616 = vmatmul.mubr.f32.gmra.mrb[0].mxu0 %v1547
    %v1617 = vpop.f32.mrb[0].mxu0
    %v1618 = vadd.f32 0.0, %v1617
    %v1619 = vpop.f32.mrb[0].mxu0
    %1620 = vdwg.mxu0
    %1621 = vrot.lane.b32.xlu0 %v319, 104
    %v1622 = vpop.permute.xlu0 %1621
    %1623 = vrot.lane.b32.xlu0 %v227, 104
    %v1624 = vpop.permute.xlu0 %1623
    %v1625 = vsel %vm322, %v1622, 0
    %v1627 = vsel %vm322, %v1624, 0
    %1629 = vmatprep.subr.mxu0 0.0
    %1630 = vmatpush1.xpose.msra.mxu0 %v1627
    %1631 = vmatprep.subr.mxu0 0.0
    %1632 = vmatpush1.xpose.msra.mxu0 0.0
    %1633 = vmatprep.subr.mxu0 0.0
    %1634 = vmatpush1.xpose.msra.mxu0 0.0
    %1635 = vmatprep.subr.mxu0 0.0
    %1636 = vmatpush1.xpose.msra.mxu0 0.0
    %1637 = vmatprep.subr.mxu0 0.0
    %1638 = vmatpush1.xpose.msra.mxu0 0.0
    %1639 = vmatprep.subr.mxu0 0.0
    %1640 = vmatpush1.xpose.msra.mxu0 0.0
    %1641 = vmatprep.subr.mxu0 0.0
    %1642 = vmatpush1.xpose.msra.mxu0 0.0
    %1643 = vmatprep.subr.mxu0 0.0
    %1644 = vmatpush1.xpose.msra.mxu0 0.0
    %1645 = vmatprep.subr.mxu0 0.0
    %1646 = vmatpush1.xpose.msra.mxu0 0.0
    %1647 = vmatprep.subr.mxu0 0.0
    %1648 = vmatpush1.xpose.msra.mxu0 0.0
    %1649 = vmatprep.subr.mxu0 0.0
    %1650 = vmatpush1.xpose.msra.mxu0 0.0
    %1651 = vmatprep.subr.mxu0 0.0
    %1652 = vmatpush1.xpose.msra.mxu0 0.0
    %1653 = vmatprep.subr.mxu0 0.0
    %1654 = vmatpush1.xpose.msra.mxu0 0.0
    %1655 = vmatprep.subr.mxu0 0.0
    %1656 = vmatpush1.xpose.msra.mxu0 0.0
    %1657 = vmatprep.subr.mxu0 0.0
    %1658 = vmatpush1.xpose.msra.mxu0 0.0
    %1659 = vmatprep.subr.mxu0 0.0
    %1660 = vmatpush1.xpose.msra.mxu0 0.0
    %1661 = vmatprep.subr.mxu0 0.0
    %1662 = vmatpush1.xpose.msra.mxu0 0.0
    %1663 = vmatprep.subr.mxu0 0.0
    %1664 = vmatpush1.xpose.msra.mxu0 0.0
    %1665 = vmatprep.subr.mxu0 0.0
    %1666 = vmatpush1.xpose.msra.mxu0 0.0
    %1667 = vmatprep.subr.mxu0 0.0
    %1668 = vmatpush1.xpose.msra.mxu0 0.0
    %1669 = vmatprep.subr.mxu0 0.0
    %1670 = vmatpush1.xpose.msra.mxu0 0.0
    %1671 = vmatprep.subr.mxu0 0.0
    %1672 = vmatpush1.xpose.msra.mxu0 0.0
    %1673 = vmatprep.subr.mxu0 0.0
    %1674 = vmatpush1.xpose.msra.mxu0 0.0
    %1675 = vmatprep.subr.mxu0 0.0
    %1676 = vmatpush1.xpose.msra.mxu0 0.0
    %1677 = vmatprep.subr.mxu0 0.0
    %1678 = vmatpush1.xpose.msra.mxu0 0.0
    %1679 = vmatprep.subr.mxu0 0.0
    %1680 = vmatpush1.xpose.msra.mxu0 0.0
    %1681 = vmatprep.subr.mxu0 0.0
    %1682 = vmatpush1.xpose.msra.mxu0 0.0
    %1683 = vmatprep.subr.mxu0 0.0
    %1684 = vmatpush1.xpose.msra.mxu0 0.0
    %1685 = vmatprep.subr.mxu0 0.0
    %1686 = vmatpush1.xpose.msra.mxu0 0.0
    %1687 = vmatprep.subr.mxu0 0.0
    %1688 = vmatpush1.xpose.msra.mxu0 0.0
    %1689 = vmatprep.subr.mxu0 0.0
    %1690 = vmatpush1.xpose.msra.mxu0 0.0
    %1691 = vmatprep.subr.mxu0 0.0
    %1692 = vmatpush1.xpose.msra.mxu0 0.0
    %1693 = vmatprep.mubr.f32.mxu0 0.0
    %1694 = vmatmul.mubr.f32.gmra.mrb[0].mxu0 %v1625
    %v1695 = vpop.f32.mrb[0].mxu0
    %v1696 = vadd.f32 0.0, %v1695
    %v1697 = vpop.f32.mrb[0].mxu0
    %1698 = vdwg.mxu0
    %v1699 = vsel %vm322, %v1618, -inf
    %1700 = vmax.xlane.f32.xlu0 %v1699
    %v1701 = vpop.xlane.xlu0 %1700
    %v1702 = vsel %vm322, %v1696, -inf
    %1703 = vmax.xlane.f32.xlu0 %v1702
    %v1704 = vpop.xlane.xlu0 %1703
    %v1705 = vsub.f32 %v1618, %v1701
    %v1706 = vsub.f32 %v1696, %v1704
    %v1707 = vmul.f32 %v1705, 1.442695
    %v1708 = vpow.pop %v1707
    %v1709 = vmul.f32 %v1706, 1.442695
    %v1710 = vpow.pop %v1709
    %v1711 = vsel %vm322, %v1708, 0.0
    %1712 = vadd.xlane.f32.xlu0 %v1711
    %v1713 = vpop.xlane.xlu0 %1712
    %v1714 = vsel %vm322, %v1710, 0.0
    %1715 = vadd.xlane.f32.xlu0 %v1714
    %v1716 = vpop.xlane.xlu0 %1715
    %v1717 = vrcp.pop %v1713
    %v1718 = vrcp.pop %v1716
    %v1719 = vmul.f32 %v1708, %v1717
    %v1720 = vmul.f32 %v1710, %v1718
    %v1723 = vsel %vm322, %v1719, 0
    %1725 = vmatprep.subr.mxu0 0.0
    %1726 = vmatpush1.msra.mxu0 %v1546
    %1727 = vmatprep.subr.mxu0 0.0
    %1728 = vmatpush1.msra.mxu0 0.0
    %1729 = vmatprep.subr.mxu0 0.0
    %1730 = vmatpush1.msra.mxu0 0.0
    %1731 = vmatprep.subr.mxu0 0.0
    %1732 = vmatpush1.msra.mxu0 0.0
    %1733 = vmatprep.subr.mxu0 0.0
    %1734 = vmatpush1.msra.mxu0 0.0
    %1735 = vmatprep.subr.mxu0 0.0
    %1736 = vmatpush1.msra.mxu0 0.0
    %1737 = vmatprep.subr.mxu0 0.0
    %1738 = vmatpush1.msra.mxu0 0.0
    %1739 = vmatprep.subr.mxu0 0.0
    %1740 = vmatpush1.msra.mxu0 0.0
    %1741 = vmatprep.subr.mxu0 0.0
    %1742 = vmatpush1.msra.mxu0 0.0
    %1743 = vmatprep.subr.mxu0 0.0
    %1744 = vmatpush1.msra.mxu0 0.0
    %1745 = vmatprep.subr.mxu0 0.0
    %1746 = vmatpush1.msra.mxu0 0.0
    %1747 = vmatprep.subr.mxu0 0.0
    %1748 = vmatpush1.msra.mxu0 0.0
    %1749 = vmatprep.subr.mxu0 0.0
    %1750 = vmatpush1.msra.mxu0 0.0
    %1751 = vmatprep.subr.mxu0 0.0
    %1752 = vmatpush1.msra.mxu0 0.0
    %1753 = vmatprep.subr.mxu0 0.0
    %1754 = vmatpush1.msra.mxu0 0.0
    %1755 = vmatprep.subr.mxu0 0.0
    %1756 = vmatpush1.msra.mxu0 0.0
    %1757 = vmatprep.subr.mxu0 0.0
    %1758 = vmatpush1.msra.mxu0 0.0
    %1759 = vmatprep.subr.mxu0 0.0
    %1760 = vmatpush1.msra.mxu0 0.0
    %1761 = vmatprep.subr.mxu0 0.0
    %1762 = vmatpush1.msra.mxu0 0.0
    %1763 = vmatprep.subr.mxu0 0.0
    %1764 = vmatpush1.msra.mxu0 0.0
    %1765 = vmatprep.subr.mxu0 0.0
    %1766 = vmatpush1.msra.mxu0 0.0
    %1767 = vmatprep.subr.mxu0 0.0
    %1768 = vmatpush1.msra.mxu0 0.0
    %1769 = vmatprep.subr.mxu0 0.0
    %1770 = vmatpush1.msra.mxu0 0.0
    %1771 = vmatprep.subr.mxu0 0.0
    %1772 = vmatpush1.msra.mxu0 0.0
    %1773 = vmatprep.subr.mxu0 0.0
    %1774 = vmatpush1.msra.mxu0 0.0
    %1775 = vmatprep.subr.mxu0 0.0
    %1776 = vmatpush1.msra.mxu0 0.0
    %1777 = vmatprep.subr.mxu0 0.0
    %1778 = vmatpush1.msra.mxu0 0.0
    %1779 = vmatprep.subr.mxu0 0.0
    %1780 = vmatpush1.msra.mxu0 0.0
    %1781 = vmatprep.subr.mxu0 0.0
    %1782 = vmatpush1.msra.mxu0 0.0
    %1783 = vmatprep.subr.mxu0 0.0
    %1784 = vmatpush1.msra.mxu0 0.0
    %1785 = vmatprep.subr.mxu0 0.0
    %1786 = vmatpush1.msra.mxu0 0.0
    %1787 = vmatprep.subr.mxu0 0.0
    %1788 = vmatpush1.msra.mxu0 0.0
    %1789 = vmatprep.mubr.f32.mxu0 0.0
    %1790 = vmatmul.mubr.f32.gmra.mrb[0].mxu0 %v1723
    %v1791 = vpop.f32.mrb[0].mxu0
    %v1792 = vadd.f32 0.0, %v1791
    %v1793 = vpop.f32.mrb[0].mxu0
    %1794 = vdwg.mxu0
    %v1797 = vsel %vm322, %v1720, 0
    %1799 = vmatprep.subr.mxu0 0.0
    %1800 = vmatpush1.msra.mxu0 %v1624
    %1801 = vmatprep.subr.mxu0 0.0
    %1802 = vmatpush1.msra.mxu0 0.0
    %1803 = vmatprep.subr.mxu0 0.0
    %1804 = vmatpush1.msra.mxu0 0.0
    %1805 = vmatprep.subr.mxu0 0.0
    %1806 = vmatpush1.msra.mxu0 0.0
    %1807 = vmatprep.subr.mxu0 0.0
    %1808 = vmatpush1.msra.mxu0 0.0
    %1809 = vmatprep.subr.mxu0 0.0
    %1810 = vmatpush1.msra.mxu0 0.0
    %1811 = vmatprep.subr.mxu0 0.0
    %1812 = vmatpush1.msra.mxu0 0.0
    %1813 = vmatprep.subr.mxu0 0.0
    %1814 = vmatpush1.msra.mxu0 0.0
    %1815 = vmatprep.subr.mxu0 0.0
    %1816 = vmatpush1.msra.mxu0 0.0
    %1817 = vmatprep.subr.mxu0 0.0
    %1818 = vmatpush1.msra.mxu0 0.0
    %1819 = vmatprep.subr.mxu0 0.0
    %1820 = vmatpush1.msra.mxu0 0.0
    %1821 = vmatprep.subr.mxu0 0.0
    %1822 = vmatpush1.msra.mxu0 0.0
    %1823 = vmatprep.subr.mxu0 0.0
    %1824 = vmatpush1.msra.mxu0 0.0
    %1825 = vmatprep.subr.mxu0 0.0
    %1826 = vmatpush1.msra.mxu0 0.0
    %1827 = vmatprep.subr.mxu0 0.0
    %1828 = vmatpush1.msra.mxu0 0.0
    %1829 = vmatprep.subr.mxu0 0.0
    %1830 = vmatpush1.msra.mxu0 0.0
    %1831 = vmatprep.subr.mxu0 0.0
    %1832 = vmatpush1.msra.mxu0 0.0
    %1833 = vmatprep.subr.mxu0 0.0
    %1834 = vmatpush1.msra.mxu0 0.0
    %1835 = vmatprep.subr.mxu0 0.0
    %1836 = vmatpush1.msra.mxu0 0.0
    %1837 = vmatprep.subr.mxu0 0.0
    %1838 = vmatpush1.msra.mxu0 0.0
    %1839 = vmatprep.subr.mxu0 0.0
    %1840 = vmatpush1.msra.mxu0 0.0
    %1841 = vmatprep.subr.mxu0 0.0
    %1842 = vmatpush1.msra.mxu0 0.0
    %1843 = vmatprep.subr.mxu0 0.0
    %1844 = vmatpush1.msra.mxu0 0.0
    %1845 = vmatprep.subr.mxu0 0.0
    %1846 = vmatpush1.msra.mxu0 0.0
    %1847 = vmatprep.subr.mxu0 0.0
    %1848 = vmatpush1.msra.mxu0 0.0
    %1849 = vmatprep.subr.mxu0 0.0
    %1850 = vmatpush1.msra.mxu0 0.0
    %1851 = vmatprep.subr.mxu0 0.0
    %1852 = vmatpush1.msra.mxu0 0.0
    %1853 = vmatprep.subr.mxu0 0.0
    %1854 = vmatpush1.msra.mxu0 0.0
    %1855 = vmatprep.subr.mxu0 0.0
    %1856 = vmatpush1.msra.mxu0 0.0
    %1857 = vmatprep.subr.mxu0 0.0
    %1858 = vmatpush1.msra.mxu0 0.0
    %1859 = vmatprep.subr.mxu0 0.0
    %1860 = vmatpush1.msra.mxu0 0.0
    %1861 = vmatprep.subr.mxu0 0.0
    %1862 = vmatpush1.msra.mxu0 0.0
    %1863 = vmatprep.mubr.f32.mxu0 0.0
    %1864 = vmatmul.mubr.f32.gmra.mrb[0].mxu0 %v1797
    %v1865 = vpop.f32.mrb[0].mxu0
    %v1866 = vadd.f32 0.0, %v1865
    %v1867 = vpop.f32.mrb[0].mxu0
    %1868 = vdwg.mxu0
    %v1869 = vld [vmem:[#allocation13 + $0x18] sm:$0xff]
    %v1871 = vsel %vm322, %v1792, 0
    %v1874 = vsel %vm322, %v1866, 0
    %1876 = vmatprep.subr.mxu0 0.0
    %1877 = vmatpush1.msra.mxu0 %v1869
    %1878 = vmatprep.subr.mxu0 0.0
    %1879 = vmatpush1.msra.mxu0 0.0
    %1880 = vmatprep.subr.mxu0 0.0
    %1881 = vmatpush1.msra.mxu0 0.0
    %1882 = vmatprep.subr.mxu0 0.0
    %1883 = vmatpush1.msra.mxu0 0.0
    %1884 = vmatprep.subr.mxu0 0.0
    %1885 = vmatpush1.msra.mxu0 0.0
    %1886 = vmatprep.subr.mxu0 0.0
    %1887 = vmatpush1.msra.mxu0 0.0
    %1888 = vmatprep.subr.mxu0 0.0
    %1889 = vmatpush1.msra.mxu0 0.0
    %1890 = vmatprep.subr.mxu0 0.0
    %1891 = vmatpush1.msra.mxu0 0.0
    %1892 = vmatprep.subr.mxu0 0.0
    %1893 = vmatpush1.msra.mxu0 0.0
    %1894 = vmatprep.subr.mxu0 0.0
    %1895 = vmatpush1.msra.mxu0 0.0
    %1896 = vmatprep.subr.mxu0 0.0
    %1897 = vmatpush1.msra.mxu0 0.0
    %1898 = vmatprep.subr.mxu0 0.0
    %1899 = vmatpush1.msra.mxu0 0.0
    %1900 = vmatprep.subr.mxu0 0.0
    %1901 = vmatpush1.msra.mxu0 0.0
    %1902 = vmatprep.subr.mxu0 0.0
    %1903 = vmatpush1.msra.mxu0 0.0
    %1904 = vmatprep.subr.mxu0 0.0
    %1905 = vmatpush1.msra.mxu0 0.0
    %1906 = vmatprep.subr.mxu0 0.0
    %1907 = vmatpush1.msra.mxu0 0.0
    %1908 = vmatprep.subr.mxu0 0.0
    %1909 = vmatpush1.msra.mxu0 0.0
    %1910 = vmatprep.subr.mxu0 0.0
    %1911 = vmatpush1.msra.mxu0 0.0
    %1912 = vmatprep.subr.mxu0 0.0
    %1913 = vmatpush1.msra.mxu0 0.0
    %1914 = vmatprep.subr.mxu0 0.0
    %1915 = vmatpush1.msra.mxu0 0.0
    %1916 = vmatprep.subr.mxu0 0.0
    %1917 = vmatpush1.msra.mxu0 0.0
    %1918 = vmatprep.subr.mxu0 0.0
    %1919 = vmatpush1.msra.mxu0 0.0
    %1920 = vmatprep.subr.mxu0 0.0
    %1921 = vmatpush1.msra.mxu0 0.0
    %1922 = vmatprep.subr.mxu0 0.0
    %1923 = vmatpush1.msra.mxu0 0.0
    %1924 = vmatprep.subr.mxu0 0.0
    %1925 = vmatpush1.msra.mxu0 0.0
    %1926 = vmatprep.subr.mxu0 0.0
    %1927 = vmatpush1.msra.mxu0 0.0
    %1928 = vmatprep.subr.mxu0 0.0
    %1929 = vmatpush1.msra.mxu0 0.0
    %1930 = vmatprep.subr.mxu0 0.0
    %1931 = vmatpush1.msra.mxu0 0.0
    %1932 = vmatprep.subr.mxu0 0.0
    %1933 = vmatpush1.msra.mxu0 0.0
    %1934 = vmatprep.subr.mxu0 0.0
    %1935 = vmatpush1.msra.mxu0 0.0
    %1936 = vmatprep.subr.mxu0 0.0
    %1937 = vmatpush1.msra.mxu0 0.0
    %1938 = vmatprep.subr.mxu0 0.0
    %1939 = vmatpush1.msra.mxu0 0.0
    %1940 = vmatprep.mubr.f32.mxu0 0.0
    %1941 = vmatmul.mubr.f32.gmra.mrb[0].mxu0 %v1871
    %v1942 = vpop.f32.mrb[0].mxu0
    %v1943 = vadd.f32 0.0, %v1942
    %v1944 = vpop.f32.mrb[0].mxu0
    %1945 = vmatprep.mubr.f32.mxu0 0.0
    %1946 = vmatmul.mubr.f32.gmra.mrb[0].mxu0 %v1874
    %v1947 = vpop.f32.mrb[0].mxu0
    %v1948 = vadd.f32 0.0, %v1947
    %v1949 = vpop.f32.mrb[0].mxu0
    %1950 = vdwg.mxu0
    %v1951 = vadd.f32 %v1541, %v1943
    %v1952 = vadd.f32 %v1542, %v1948
    %v1953 = vld [vmem:[#allocation14] sm:$0x1]
    %v1955 = vlaneseq
    %v1956 = vshrl.u32 %v1955, 7
    %v1957 = vsub.s32 0, %v1956
    %v1958 = vrot.slane %v1953, %v1957
    %v1960 = vadd.f32 %v1951, %v1958
    %v1961 = vadd.f32 %v1952, %v1958
    %1962 = vst.msk [vmem:[#allocation16] sm:$0xff] %vm148, %v1960
    %1963 = vst.msk [vmem:[#allocation16 + $0x8] sm:$0xff] %vm148, %v1961
    // Predicated region
    $region66: #{tpu_custom_call.1} parent=1 // pred_check
      _
    $region67: #{tpu_custom_call.1} parent=1 // pred_check_branch
      %1965 = sbr.rel (0) target = $region69
    $region68: #{tpu_custom_call.1} parent=1 // pred_region
      %s1967 = ssub.s32 256, 256
      %1968 = vsyncadd [#allocation4], %s1967
      %s1969 = sshll.u32 [#allocation16], 4
      %s1970 = int_to_ptr.vmem [resolvable:$true] %s1969
      %1975 = dma.vmem_to_hbm [thread:$0]  %s1970, 256, %s8, [#allocation4], 128, 128, 8
    $region69: #{tpu_custom_call.1} parent=1 // pred_fallthru
      _
    // Predicated region
    $region70: #{tpu_custom_call.1} parent=1 // pred_check
      _
    $region71: #{tpu_custom_call.1} parent=1 // pred_check_branch
      %1977 = sbr.rel (0) target = $region73
    $region72: #{tpu_custom_call.1} parent=1 // pred_region
      %1978 = dma.done [#allocation4], 256
    $region73: #{tpu_custom_call.1} parent=1 // pred_fallthru
      _
    %1979 = vsyncpa [#allocation3], 1
    %1980 = vsyncpa [#allocation6], 1
    %1981 = vsyncpa [#allocation9], 1
    %1982 = vsyncpa [#allocation12], 1
    %1983 = vsyncpa [#allocation15], 1
    %1984 = vsyncpa [#allocation4], 1

</llo_original>
